<compile_context>
chip_gen: v6e
topology: v6e:2x2x1
jax: 0.10.0
libtpu: 0.0.40
codegen_flags: <defaults>
</compile_context>

<pallas_src>
import functools

import jax
import jax.numpy as jnp
from jax import lax
from jax.experimental import pallas as pl
from jax.experimental.pallas import tpu as pltpu


def _attention_kernel(x_ref, wqkv_ref, wp_ref, bp_ref, o_ref,
                      qkv_ref, out_ref, *, num_heads, head_dim, all_head_dim):
    """One batch element: fused QKV, per-head attention, fused output proj."""
    x = x_ref[0]                                                     # (N, C) bf16

    # Fused QKV projection, contraction dim = C, output lanes = 3A.
    # Accumulate in f32 on the MXU, cast once to bf16 for the slab (the same
    # bf16 values the per-head dots consume -> no extra precision loss).
    qkv_ref[...] = jnp.dot(x, wqkv_ref[...],
                           preferred_element_type=jnp.float32
                           ).astype(jnp.bfloat16)                    # (N, 3A) bf16

    # Per-head attention (heads statically unrolled; static lane slices).
    for h in range(num_heads):
        q0 = h * head_dim
        k0 = all_head_dim + h * head_dim
        v0 = 2 * all_head_dim + h * head_dim
        q_h = qkv_ref[:, q0:q0 + head_dim]                           # (N, hd) bf16
        k_h = qkv_ref[:, k0:k0 + head_dim]                           # (N, hd) bf16
        v_h = qkv_ref[:, v0:v0 + head_dim]                           # (N, hd) bf16

        # q @ k^T with the transpose folded into the MXU operand fetch.
        s = lax.dot_general(q_h, k_h, (((1,), (1,)), ((), ())),
                            preferred_element_type=jnp.float32)      # (N, N) f32

        # Numerically stable softmax with deferred normalization.
        m = jnp.max(s, axis=-1, keepdims=True)
        e = jnp.exp(s - m)                                           # (N, N) f32
        l = jnp.sum(e, axis=-1, keepdims=True)                       # (N, 1)  f32
        out_h = jnp.dot(e.astype(jnp.bfloat16), v_h,
                        preferred_element_type=jnp.float32)          # (N, hd) f32
        out_h = out_h * pl.reciprocal(l, approx=True)

        # Drop this head's output into its lane slice of the concat slab.
        out_ref[:, q0:q0 + head_dim] = out_h.astype(jnp.bfloat16)

    # Single fused output projection: (N, A) @ (A, C), f32 accumulate + bias.
    y = jnp.dot(out_ref[...], wp_ref[...],
                preferred_element_type=jnp.float32) + bp_ref[...]
    o_ref[0] = y.astype(o_ref.dtype)


def attention_pallas(x, wqkv, wproj, bproj, *, num_heads):
    """x: (B, N, C) float32.
    wqkv : (3*A, C)  PyTorch nn.Linear layout (out_features, in_features)
    wproj: (C, A)
    bproj: (C,)
    """
    B, N, C = x.shape
    all_head_dim = wqkv.shape[0] // 3
    head_dim = all_head_dim // num_heads
    scale = head_dim ** (-0.5)

    # --- one-time weight prep (plain JAX, outside the hot path) ---
    # Fold the q scale into the q rows of the fused QKV weight.
    wqkv_scaled = jnp.concatenate(
        [wqkv[:all_head_dim] * scale, wqkv[all_head_dim:]], axis=0)   # (3A, C)
    w_qkv = wqkv_scaled.T.astype(jnp.bfloat16)                        # (C, 3A)
    w_p = wproj.T.astype(jnp.bfloat16)                                # (A, C)
    b_p = bproj.reshape(1, C).astype(jnp.float32)                     # (1, C)
    x_bf = x.astype(jnp.bfloat16)

    kernel = functools.partial(_attention_kernel, num_heads=num_heads,
                               head_dim=head_dim, all_head_dim=all_head_dim)

    grid_spec = pltpu.PrefetchScalarGridSpec(
        num_scalar_prefetch=0,
        grid=(B,),
        in_specs=[
            pl.BlockSpec((1, N, C), lambda b: (b, 0, 0)),             # x
            pl.BlockSpec((C, 3 * all_head_dim), lambda b: (0, 0)),    # Wqkv (resident)
            pl.BlockSpec((all_head_dim, C), lambda b: (0, 0)),        # Wproj^T (resident)
            pl.BlockSpec((1, C), lambda b: (0, 0)),                   # bias (resident)
        ],
        out_specs=pl.BlockSpec((1, N, C), lambda b: (b, 0, 0)),
        scratch_shapes=[
            pltpu.VMEM((N, 3 * all_head_dim), jnp.bfloat16),          # QKV slab
            pltpu.VMEM((N, all_head_dim), jnp.bfloat16),              # concat-head slab
        ],
    )

    return pl.pallas_call(
        kernel,
        out_shape=jax.ShapeDtypeStruct((B, N, C), x.dtype),
        grid_spec=grid_spec,
        compiler_params=pltpu.CompilerParams(
            dimension_semantics=("parallel",)),
    )(x_bf, w_qkv, w_p, b_p)


def attention_ref(x, wqkv, wproj, bproj, *, num_heads):
    """Pure-JAX f32 reference mirroring the PyTorch forward exactly."""
    B, N, C = x.shape
    all_head_dim = wqkv.shape[0] // 3
    head_dim = all_head_dim // num_heads
    scale = head_dim ** (-0.5)
    qkv = x @ wqkv.T                                                  # (B, N, 3A)
    qkv = qkv.reshape(B, N, 3, num_heads, head_dim).transpose(2, 0, 3, 1, 4)
    q, k, v = qkv[0] * scale, qkv[1], qkv[2]                          # (B, H, N, hd)
    attn = jnp.einsum('bhqd,bhkd->bhqk', q, k)
    attn = jax.nn.softmax(attn, axis=-1)
    out = jnp.einsum('bhqk,bhkd->bhqd', attn, v)
    out = out.transpose(0, 2, 1, 3).reshape(B, N, all_head_dim)
    return out @ wproj.T + bproj


if __name__ == "__main__":
    B, N, C = 2, 8, 32
    num_heads = 8
    head_dim = C // num_heads
    all_head_dim = head_dim * num_heads

    key = jax.random.PRNGKey(0)
    k_x, k_qkv, k_pw, k_pb = jax.random.split(key, 4)

    x = jax.random.normal(k_x, (B, N, C), dtype=jnp.float32)
    # Deterministic synthetic parameters (PyTorch (out, in) layout).
    wqkv = jax.random.normal(k_qkv, (3 * all_head_dim, C), dtype=jnp.float32) * 0.05
    wproj = jax.random.normal(k_pw, (C, all_head_dim), dtype=jnp.float32) * 0.05
    bproj = jax.random.normal(k_pb, (C,), dtype=jnp.float32) * 0.05

    y = attention_pallas(x, wqkv, wproj, bproj, num_heads=num_heads)
    y = jax.block_until_ready(y)

    y_ref = attention_ref(x, wqkv, wproj, bproj, num_heads=num_heads)
    assert y.shape == (B, N, C)
    # bf16 MXU operands -> compare against the f32 reference with a loose tol.
    assert jnp.allclose(y, y_ref, atol=2e-2, rtol=2e-2), (
        "mismatch vs reference, max abs err = "
        f"{float(jnp.max(jnp.abs(y - y_ref)))}")

    print("KERNEL_OK")
</pallas_src>

<mosaic_0001>
module attributes {stable_mosaic.version = 11 : i64} {
  func.func @_attention_kernel(%arg0: i32, %arg1: memref<1x8x32xbf16, #tpu.memory_space<vmem>>, %arg2: memref<32x96xbf16, #tpu.memory_space<vmem>>, %arg3: memref<32x32xbf16, #tpu.memory_space<vmem>>, %arg4: memref<1x32xf32, #tpu.memory_space<vmem>>, %arg5: memref<1x8x32xf32, #tpu.memory_space<vmem>>, %arg6: memref<8x96xbf16, #tpu.memory_space<vmem>>, %arg7: memref<8x32xbf16, #tpu.memory_space<vmem>>) attributes {dimension_semantics = [#tpu.dimension_semantics<parallel>], iteration_bounds = array<i64: 2>, scalar_prefetch = 0 : i64, scratch_operands = 2 : i64, tpu.core_type = #tpu.core_type<tc>, window_params = [{transform_indices = @transform_0, window_bounds = array<i64: 1, 8, 32>}, {pipeline_mode = #tpu.pipeline_mode<synchronous>, transform_indices = @transform_1, window_bounds = array<i64: 32, 96>}, {pipeline_mode = #tpu.pipeline_mode<synchronous>, transform_indices = @transform_2, window_bounds = array<i64: 32, 32>}, {pipeline_mode = #tpu.pipeline_mode<synchronous>, transform_indices = @transform_3, window_bounds = array<i64: 1, 32>}, {transform_indices = @transform_4, window_bounds = array<i64: 1, 8, 32>}]} {
    %c0 = arith.constant 0 : index
    %c0_0 = arith.constant 0 : index
    %c0_1 = arith.constant 0 : index
    %0 = vector.load %arg1[%c0, %c0_0, %c0_1] : memref<1x8x32xbf16, #tpu.memory_space<vmem>>, vector<1x8x32xbf16>
    %1 = vector.shape_cast %0 : vector<1x8x32xbf16> to vector<8x32xbf16>
    %c0_2 = arith.constant 0 : index
    %c0_3 = arith.constant 0 : index
    %2 = vector.load %arg2[%c0_2, %c0_3] : memref<32x96xbf16, #tpu.memory_space<vmem>>, vector<32x96xbf16>
    %cst = arith.constant dense<0.000000e+00> : vector<8x96xf32>
    %3 = tpu.matmul %1, %2, %cst {dimension_numbers = #tpu.dot_dimension_numbers<[1], [0], [0], [1], [0, 0, 1, 1], [], []>} : vector<8x32xbf16>, vector<32x96xbf16>, vector<8x96xf32> -> vector<8x96xf32>
    %4 = arith.truncf %3 : vector<8x96xf32> to vector<8x96xbf16>
    %c0_4 = arith.constant 0 : index
    %c0_5 = arith.constant 0 : index
    %5 = vector.load %arg6[%c0_4, %c0_5] : memref<8x96xbf16, #tpu.memory_space<vmem>>, vector<8x96xbf16>
    tpu.vector_store %arg6[%c0_4, %c0_5], %4 {strides = array<i32>} : memref<8x96xbf16, #tpu.memory_space<vmem>>, vector<8x96xbf16>,
    %c0_6 = arith.constant 0 : index
    %c0_7 = arith.constant 0 : index
    %6 = vector.load %arg6[%c0_6, %c0_7] : memref<8x96xbf16, #tpu.memory_space<vmem>>, vector<8x4xbf16>
    %c0_8 = arith.constant 0 : index
    %c32 = arith.constant 32 : index
    %7 = vector.load %arg6[%c0_8, %c32] : memref<8x96xbf16, #tpu.memory_space<vmem>>, vector<8x4xbf16>
    %c0_9 = arith.constant 0 : index
    %c64 = arith.constant 64 : index
    %8 = vector.load %arg6[%c0_9, %c64] : memref<8x96xbf16, #tpu.memory_space<vmem>>, vector<8x4xbf16>
    %cst_10 = arith.constant dense<0.000000e+00> : vector<8x8xf32>
    %9 = tpu.matmul %6, %7, %cst_10 {dimension_numbers = #tpu.dot_dimension_numbers<[1], [1], [0], [0], [0, 0, 1, 0], [], []>} : vector<8x4xbf16>, vector<8x4xbf16>, vector<8x8xf32> -> vector<8x8xf32>
    %cst_11 = arith.constant dense<0xFF800000> : vector<8xf32>
    %10 = vector.multi_reduction <maximumf>, %9, %cst_11 [1] : vector<8x8xf32> to vector<8xf32>
    %11 = vector.shape_cast %10 : vector<8xf32> to vector<8x1xf32>
    %12 = vector.broadcast %11 : vector<8x1xf32> to vector<8x8xf32>
    %13 = arith.subf %9, %12 : vector<8x8xf32>
    %14 = math.exp %13 : vector<8x8xf32>
    %cst_12 = arith.constant dense<0.000000e+00> : vector<8xf32>
    %15 = vector.multi_reduction <add>, %14, %cst_12 [1] : vector<8x8xf32> to vector<8xf32>
    %16 = vector.shape_cast %15 : vector<8xf32> to vector<8x1xf32>
    %17 = arith.truncf %14 : vector<8x8xf32> to vector<8x8xbf16>
    %cst_13 = arith.constant dense<0.000000e+00> : vector<8x4xf32>
    %18 = tpu.matmul %17, %8, %cst_13 {dimension_numbers = #tpu.dot_dimension_numbers<[1], [0], [0], [1], [0, 0, 1, 1], [], []>} : vector<8x8xbf16>, vector<8x4xbf16>, vector<8x4xf32> -> vector<8x4xf32>
    %19 = tpu.reciprocal %16 {approx = true} : vector<8x1xf32> -> vector<8x1xf32>
    %20 = vector.broadcast %19 : vector<8x1xf32> to vector<8x4xf32>
    %21 = arith.mulf %18, %20 : vector<8x4xf32>
    %22 = arith.truncf %21 : vector<8x4xf32> to vector<8x4xbf16>
    %c0_14 = arith.constant 0 : index
    %c0_15 = arith.constant 0 : index
    %23 = vector.load %arg7[%c0_14, %c0_15] : memref<8x32xbf16, #tpu.memory_space<vmem>>, vector<8x4xbf16>
    tpu.vector_store %arg7[%c0_14, %c0_15], %22 {strides = array<i32>} : memref<8x32xbf16, #tpu.memory_space<vmem>>, vector<8x4xbf16>,
    %c0_16 = arith.constant 0 : index
    %c4 = arith.constant 4 : index
    %24 = vector.load %arg6[%c0_16, %c4] : memref<8x96xbf16, #tpu.memory_space<vmem>>, vector<8x4xbf16>
    %c0_17 = arith.constant 0 : index
    %c36 = arith.constant 36 : index
    %25 = vector.load %arg6[%c0_17, %c36] : memref<8x96xbf16, #tpu.memory_space<vmem>>, vector<8x4xbf16>
    %c0_18 = arith.constant 0 : index
    %c68 = arith.constant 68 : index
    %26 = vector.load %arg6[%c0_18, %c68] : memref<8x96xbf16, #tpu.memory_space<vmem>>, vector<8x4xbf16>
    %cst_19 = arith.constant dense<0.000000e+00> : vector<8x8xf32>
    %27 = tpu.matmul %24, %25, %cst_19 {dimension_numbers = #tpu.dot_dimension_numbers<[1], [1], [0], [0], [0, 0, 1, 0], [], []>} : vector<8x4xbf16>, vector<8x4xbf16>, vector<8x8xf32> -> vector<8x8xf32>
    %cst_20 = arith.constant dense<0xFF800000> : vector<8xf32>
    %28 = vector.multi_reduction <maximumf>, %27, %cst_20 [1] : vector<8x8xf32> to vector<8xf32>
    %29 = vector.shape_cast %28 : vector<8xf32> to vector<8x1xf32>
    %30 = vector.broadcast %29 : vector<8x1xf32> to vector<8x8xf32>
    %31 = arith.subf %27, %30 : vector<8x8xf32>
    %32 = math.exp %31 : vector<8x8xf32>
    %cst_21 = arith.constant dense<0.000000e+00> : vector<8xf32>
    %33 = vector.multi_reduction <add>, %32, %cst_21 [1] : vector<8x8xf32> to vector<8xf32>
    %34 = vector.shape_cast %33 : vector<8xf32> to vector<8x1xf32>
    %35 = arith.truncf %32 : vector<8x8xf32> to vector<8x8xbf16>
    %cst_22 = arith.constant dense<0.000000e+00> : vector<8x4xf32>
    %36 = tpu.matmul %35, %26, %cst_22 {dimension_numbers = #tpu.dot_dimension_numbers<[1], [0], [0], [1], [0, 0, 1, 1], [], []>} : vector<8x8xbf16>, vector<8x4xbf16>, vector<8x4xf32> -> vector<8x4xf32>
    %37 = tpu.reciprocal %34 {approx = true} : vector<8x1xf32> -> vector<8x1xf32>
    %38 = vector.broadcast %37 : vector<8x1xf32> to vector<8x4xf32>
    %39 = arith.mulf %36, %38 : vector<8x4xf32>
    %40 = arith.truncf %39 : vector<8x4xf32> to vector<8x4xbf16>
    %c0_23 = arith.constant 0 : index
    %c4_24 = arith.constant 4 : index
    %41 = vector.load %arg7[%c0_23, %c4_24] : memref<8x32xbf16, #tpu.memory_space<vmem>>, vector<8x4xbf16>
    tpu.vector_store %arg7[%c0_23, %c4_24], %40 {strides = array<i32>} : memref<8x32xbf16, #tpu.memory_space<vmem>>, vector<8x4xbf16>,
    %c0_25 = arith.constant 0 : index
    %c8 = arith.constant 8 : index
    %42 = vector.load %arg6[%c0_25, %c8] : memref<8x96xbf16, #tpu.memory_space<vmem>>, vector<8x4xbf16>
    %c0_26 = arith.constant 0 : index
    %c40 = arith.constant 40 : index
    %43 = vector.load %arg6[%c0_26, %c40] : memref<8x96xbf16, #tpu.memory_space<vmem>>, vector<8x4xbf16>
    %c0_27 = arith.constant 0 : index
    %c72 = arith.constant 72 : index
    %44 = vector.load %arg6[%c0_27, %c72] : memref<8x96xbf16, #tpu.memory_space<vmem>>, vector<8x4xbf16>
    %cst_28 = arith.constant dense<0.000000e+00> : vector<8x8xf32>
    %45 = tpu.matmul %42, %43, %cst_28 {dimension_numbers = #tpu.dot_dimension_numbers<[1], [1], [0], [0], [0, 0, 1, 0], [], []>} : vector<8x4xbf16>, vector<8x4xbf16>, vector<8x8xf32> -> vector<8x8xf32>
    %cst_29 = arith.constant dense<0xFF800000> : vector<8xf32>
    %46 = vector.multi_reduction <maximumf>, %45, %cst_29 [1] : vector<8x8xf32> to vector<8xf32>
    %47 = vector.shape_cast %46 : vector<8xf32> to vector<8x1xf32>
    %48 = vector.broadcast %47 : vector<8x1xf32> to vector<8x8xf32>
    %49 = arith.subf %45, %48 : vector<8x8xf32>
    %50 = math.exp %49 : vector<8x8xf32>
    %cst_30 = arith.constant dense<0.000000e+00> : vector<8xf32>
    %51 = vector.multi_reduction <add>, %50, %cst_30 [1] : vector<8x8xf32> to vector<8xf32>
    %52 = vector.shape_cast %51 : vector<8xf32> to vector<8x1xf32>
    %53 = arith.truncf %50 : vector<8x8xf32> to vector<8x8xbf16>
    %cst_31 = arith.constant dense<0.000000e+00> : vector<8x4xf32>
    %54 = tpu.matmul %53, %44, %cst_31 {dimension_numbers = #tpu.dot_dimension_numbers<[1], [0], [0], [1], [0, 0, 1, 1], [], []>} : vector<8x8xbf16>, vector<8x4xbf16>, vector<8x4xf32> -> vector<8x4xf32>
    %55 = tpu.reciprocal %52 {approx = true} : vector<8x1xf32> -> vector<8x1xf32>
    %56 = vector.broadcast %55 : vector<8x1xf32> to vector<8x4xf32>
    %57 = arith.mulf %54, %56 : vector<8x4xf32>
    %58 = arith.truncf %57 : vector<8x4xf32> to vector<8x4xbf16>
    %c0_32 = arith.constant 0 : index
    %c8_33 = arith.constant 8 : index
    %59 = vector.load %arg7[%c0_32, %c8_33] : memref<8x32xbf16, #tpu.memory_space<vmem>>, vector<8x4xbf16>
    tpu.vector_store %arg7[%c0_32, %c8_33], %58 {strides = array<i32>} : memref<8x32xbf16, #tpu.memory_space<vmem>>, vector<8x4xbf16>,
    %c0_34 = arith.constant 0 : index
    %c12 = arith.constant 12 : index
    %60 = vector.load %arg6[%c0_34, %c12] : memref<8x96xbf16, #tpu.memory_space<vmem>>, vector<8x4xbf16>
    %c0_35 = arith.constant 0 : index
    %c44 = arith.constant 44 : index
    %61 = vector.load %arg6[%c0_35, %c44] : memref<8x96xbf16, #tpu.memory_space<vmem>>, vector<8x4xbf16>
    %c0_36 = arith.constant 0 : index
    %c76 = arith.constant 76 : index
    %62 = vector.load %arg6[%c0_36, %c76] : memref<8x96xbf16, #tpu.memory_space<vmem>>, vector<8x4xbf16>
    %cst_37 = arith.constant dense<0.000000e+00> : vector<8x8xf32>
    %63 = tpu.matmul %60, %61, %cst_37 {dimension_numbers = #tpu.dot_dimension_numbers<[1], [1], [0], [0], [0, 0, 1, 0], [], []>} : vector<8x4xbf16>, vector<8x4xbf16>, vector<8x8xf32> -> vector<8x8xf32>
    %cst_38 = arith.constant dense<0xFF800000> : vector<8xf32>
    %64 = vector.multi_reduction <maximumf>, %63, %cst_38 [1] : vector<8x8xf32> to vector<8xf32>
    %65 = vector.shape_cast %64 : vector<8xf32> to vector<8x1xf32>
    %66 = vector.broadcast %65 : vector<8x1xf32> to vector<8x8xf32>
    %67 = arith.subf %63, %66 : vector<8x8xf32>
    %68 = math.exp %67 : vector<8x8xf32>
    %cst_39 = arith.constant dense<0.000000e+00> : vector<8xf32>
    %69 = vector.multi_reduction <add>, %68, %cst_39 [1] : vector<8x8xf32> to vector<8xf32>
    %70 = vector.shape_cast %69 : vector<8xf32> to vector<8x1xf32>
    %71 = arith.truncf %68 : vector<8x8xf32> to vector<8x8xbf16>
    %cst_40 = arith.constant dense<0.000000e+00> : vector<8x4xf32>
    %72 = tpu.matmul %71, %62, %cst_40 {dimension_numbers = #tpu.dot_dimension_numbers<[1], [0], [0], [1], [0, 0, 1, 1], [], []>} : vector<8x8xbf16>, vector<8x4xbf16>, vector<8x4xf32> -> vector<8x4xf32>
    %73 = tpu.reciprocal %70 {approx = true} : vector<8x1xf32> -> vector<8x1xf32>
    %74 = vector.broadcast %73 : vector<8x1xf32> to vector<8x4xf32>
    %75 = arith.mulf %72, %74 : vector<8x4xf32>
    %76 = arith.truncf %75 : vector<8x4xf32> to vector<8x4xbf16>
    %c0_41 = arith.constant 0 : index
    %c12_42 = arith.constant 12 : index
    %77 = vector.load %arg7[%c0_41, %c12_42] : memref<8x32xbf16, #tpu.memory_space<vmem>>, vector<8x4xbf16>
    tpu.vector_store %arg7[%c0_41, %c12_42], %76 {strides = array<i32>} : memref<8x32xbf16, #tpu.memory_space<vmem>>, vector<8x4xbf16>,
    %c0_43 = arith.constant 0 : index
    %c16 = arith.constant 16 : index
    %78 = vector.load %arg6[%c0_43, %c16] : memref<8x96xbf16, #tpu.memory_space<vmem>>, vector<8x4xbf16>
    %c0_44 = arith.constant 0 : index
    %c48 = arith.constant 48 : index
    %79 = vector.load %arg6[%c0_44, %c48] : memref<8x96xbf16, #tpu.memory_space<vmem>>, vector<8x4xbf16>
    %c0_45 = arith.constant 0 : index
    %c80 = arith.constant 80 : index
    %80 = vector.load %arg6[%c0_45, %c80] : memref<8x96xbf16, #tpu.memory_space<vmem>>, vector<8x4xbf16>
    %cst_46 = arith.constant dense<0.000000e+00> : vector<8x8xf32>
    %81 = tpu.matmul %78, %79, %cst_46 {dimension_numbers = #tpu.dot_dimension_numbers<[1], [1], [0], [0], [0, 0, 1, 0], [], []>} : vector<8x4xbf16>, vector<8x4xbf16>, vector<8x8xf32> -> vector<8x8xf32>
    %cst_47 = arith.constant dense<0xFF800000> : vector<8xf32>
    %82 = vector.multi_reduction <maximumf>, %81, %cst_47 [1] : vector<8x8xf32> to vector<8xf32>
    %83 = vector.shape_cast %82 : vector<8xf32> to vector<8x1xf32>
    %84 = vector.broadcast %83 : vector<8x1xf32> to vector<8x8xf32>
    %85 = arith.subf %81, %84 : vector<8x8xf32>
    %86 = math.exp %85 : vector<8x8xf32>
    %cst_48 = arith.constant dense<0.000000e+00> : vector<8xf32>
    %87 = vector.multi_reduction <add>, %86, %cst_48 [1] : vector<8x8xf32> to vector<8xf32>
    %88 = vector.shape_cast %87 : vector<8xf32> to vector<8x1xf32>
    %89 = arith.truncf %86 : vector<8x8xf32> to vector<8x8xbf16>
    %cst_49 = arith.constant dense<0.000000e+00> : vector<8x4xf32>
    %90 = tpu.matmul %89, %80, %cst_49 {dimension_numbers = #tpu.dot_dimension_numbers<[1], [0], [0], [1], [0, 0, 1, 1], [], []>} : vector<8x8xbf16>, vector<8x4xbf16>, vector<8x4xf32> -> vector<8x4xf32>
    %91 = tpu.reciprocal %88 {approx = true} : vector<8x1xf32> -> vector<8x1xf32>
    %92 = vector.broadcast %91 : vector<8x1xf32> to vector<8x4xf32>
    %93 = arith.mulf %90, %92 : vector<8x4xf32>
    %94 = arith.truncf %93 : vector<8x4xf32> to vector<8x4xbf16>
    %c0_50 = arith.constant 0 : index
    %c16_51 = arith.constant 16 : index
    %95 = vector.load %arg7[%c0_50, %c16_51] : memref<8x32xbf16, #tpu.memory_space<vmem>>, vector<8x4xbf16>
    tpu.vector_store %arg7[%c0_50, %c16_51], %94 {strides = array<i32>} : memref<8x32xbf16, #tpu.memory_space<vmem>>, vector<8x4xbf16>,
    %c0_52 = arith.constant 0 : index
    %c20 = arith.constant 20 : index
    %96 = vector.load %arg6[%c0_52, %c20] : memref<8x96xbf16, #tpu.memory_space<vmem>>, vector<8x4xbf16>
    %c0_53 = arith.constant 0 : index
    %c52 = arith.constant 52 : index
    %97 = vector.load %arg6[%c0_53, %c52] : memref<8x96xbf16, #tpu.memory_space<vmem>>, vector<8x4xbf16>
    %c0_54 = arith.constant 0 : index
    %c84 = arith.constant 84 : index
    %98 = vector.load %arg6[%c0_54, %c84] : memref<8x96xbf16, #tpu.memory_space<vmem>>, vector<8x4xbf16>
    %cst_55 = arith.constant dense<0.000000e+00> : vector<8x8xf32>
    %99 = tpu.matmul %96, %97, %cst_55 {dimension_numbers = #tpu.dot_dimension_numbers<[1], [1], [0], [0], [0, 0, 1, 0], [], []>} : vector<8x4xbf16>, vector<8x4xbf16>, vector<8x8xf32> -> vector<8x8xf32>
    %cst_56 = arith.constant dense<0xFF800000> : vector<8xf32>
    %100 = vector.multi_reduction <maximumf>, %99, %cst_56 [1] : vector<8x8xf32> to vector<8xf32>
    %101 = vector.shape_cast %100 : vector<8xf32> to vector<8x1xf32>
    %102 = vector.broadcast %101 : vector<8x1xf32> to vector<8x8xf32>
    %103 = arith.subf %99, %102 : vector<8x8xf32>
    %104 = math.exp %103 : vector<8x8xf32>
    %cst_57 = arith.constant dense<0.000000e+00> : vector<8xf32>
    %105 = vector.multi_reduction <add>, %104, %cst_57 [1] : vector<8x8xf32> to vector<8xf32>
    %106 = vector.shape_cast %105 : vector<8xf32> to vector<8x1xf32>
    %107 = arith.truncf %104 : vector<8x8xf32> to vector<8x8xbf16>
    %cst_58 = arith.constant dense<0.000000e+00> : vector<8x4xf32>
    %108 = tpu.matmul %107, %98, %cst_58 {dimension_numbers = #tpu.dot_dimension_numbers<[1], [0], [0], [1], [0, 0, 1, 1], [], []>} : vector<8x8xbf16>, vector<8x4xbf16>, vector<8x4xf32> -> vector<8x4xf32>
    %109 = tpu.reciprocal %106 {approx = true} : vector<8x1xf32> -> vector<8x1xf32>
    %110 = vector.broadcast %109 : vector<8x1xf32> to vector<8x4xf32>
    %111 = arith.mulf %108, %110 : vector<8x4xf32>
    %112 = arith.truncf %111 : vector<8x4xf32> to vector<8x4xbf16>
    %c0_59 = arith.constant 0 : index
    %c20_60 = arith.constant 20 : index
    %113 = vector.load %arg7[%c0_59, %c20_60] : memref<8x32xbf16, #tpu.memory_space<vmem>>, vector<8x4xbf16>
    tpu.vector_store %arg7[%c0_59, %c20_60], %112 {strides = array<i32>} : memref<8x32xbf16, #tpu.memory_space<vmem>>, vector<8x4xbf16>,
    %c0_61 = arith.constant 0 : index
    %c24 = arith.constant 24 : index
    %114 = vector.load %arg6[%c0_61, %c24] : memref<8x96xbf16, #tpu.memory_space<vmem>>, vector<8x4xbf16>
    %c0_62 = arith.constant 0 : index
    %c56 = arith.constant 56 : index
    %115 = vector.load %arg6[%c0_62, %c56] : memref<8x96xbf16, #tpu.memory_space<vmem>>, vector<8x4xbf16>
    %c0_63 = arith.constant 0 : index
    %c88 = arith.constant 88 : index
    %116 = vector.load %arg6[%c0_63, %c88] : memref<8x96xbf16, #tpu.memory_space<vmem>>, vector<8x4xbf16>
    %cst_64 = arith.constant dense<0.000000e+00> : vector<8x8xf32>
    %117 = tpu.matmul %114, %115, %cst_64 {dimension_numbers = #tpu.dot_dimension_numbers<[1], [1], [0], [0], [0, 0, 1, 0], [], []>} : vector<8x4xbf16>, vector<8x4xbf16>, vector<8x8xf32> -> vector<8x8xf32>
    %cst_65 = arith.constant dense<0xFF800000> : vector<8xf32>
    %118 = vector.multi_reduction <maximumf>, %117, %cst_65 [1] : vector<8x8xf32> to vector<8xf32>
    %119 = vector.shape_cast %118 : vector<8xf32> to vector<8x1xf32>
    %120 = vector.broadcast %119 : vector<8x1xf32> to vector<8x8xf32>
    %121 = arith.subf %117, %120 : vector<8x8xf32>
    %122 = math.exp %121 : vector<8x8xf32>
    %cst_66 = arith.constant dense<0.000000e+00> : vector<8xf32>
    %123 = vector.multi_reduction <add>, %122, %cst_66 [1] : vector<8x8xf32> to vector<8xf32>
    %124 = vector.shape_cast %123 : vector<8xf32> to vector<8x1xf32>
    %125 = arith.truncf %122 : vector<8x8xf32> to vector<8x8xbf16>
    %cst_67 = arith.constant dense<0.000000e+00> : vector<8x4xf32>
    %126 = tpu.matmul %125, %116, %cst_67 {dimension_numbers = #tpu.dot_dimension_numbers<[1], [0], [0], [1], [0, 0, 1, 1], [], []>} : vector<8x8xbf16>, vector<8x4xbf16>, vector<8x4xf32> -> vector<8x4xf32>
    %127 = tpu.reciprocal %124 {approx = true} : vector<8x1xf32> -> vector<8x1xf32>
    %128 = vector.broadcast %127 : vector<8x1xf32> to vector<8x4xf32>
    %129 = arith.mulf %126, %128 : vector<8x4xf32>
    %130 = arith.truncf %129 : vector<8x4xf32> to vector<8x4xbf16>
    %c0_68 = arith.constant 0 : index
    %c24_69 = arith.constant 24 : index
    %131 = vector.load %arg7[%c0_68, %c24_69] : memref<8x32xbf16, #tpu.memory_space<vmem>>, vector<8x4xbf16>
    tpu.vector_store %arg7[%c0_68, %c24_69], %130 {strides = array<i32>} : memref<8x32xbf16, #tpu.memory_space<vmem>>, vector<8x4xbf16>,
    %c0_70 = arith.constant 0 : index
    %c28 = arith.constant 28 : index
    %132 = vector.load %arg6[%c0_70, %c28] : memref<8x96xbf16, #tpu.memory_space<vmem>>, vector<8x4xbf16>
    %c0_71 = arith.constant 0 : index
    %c60 = arith.constant 60 : index
    %133 = vector.load %arg6[%c0_71, %c60] : memref<8x96xbf16, #tpu.memory_space<vmem>>, vector<8x4xbf16>
    %c0_72 = arith.constant 0 : index
    %c92 = arith.constant 92 : index
    %134 = vector.load %arg6[%c0_72, %c92] : memref<8x96xbf16, #tpu.memory_space<vmem>>, vector<8x4xbf16>
    %cst_73 = arith.constant dense<0.000000e+00> : vector<8x8xf32>
    %135 = tpu.matmul %132, %133, %cst_73 {dimension_numbers = #tpu.dot_dimension_numbers<[1], [1], [0], [0], [0, 0, 1, 0], [], []>} : vector<8x4xbf16>, vector<8x4xbf16>, vector<8x8xf32> -> vector<8x8xf32>
    %cst_74 = arith.constant dense<0xFF800000> : vector<8xf32>
    %136 = vector.multi_reduction <maximumf>, %135, %cst_74 [1] : vector<8x8xf32> to vector<8xf32>
    %137 = vector.shape_cast %136 : vector<8xf32> to vector<8x1xf32>
    %138 = vector.broadcast %137 : vector<8x1xf32> to vector<8x8xf32>
    %139 = arith.subf %135, %138 : vector<8x8xf32>
    %140 = math.exp %139 : vector<8x8xf32>
    %cst_75 = arith.constant dense<0.000000e+00> : vector<8xf32>
    %141 = vector.multi_reduction <add>, %140, %cst_75 [1] : vector<8x8xf32> to vector<8xf32>
    %142 = vector.shape_cast %141 : vector<8xf32> to vector<8x1xf32>
    %143 = arith.truncf %140 : vector<8x8xf32> to vector<8x8xbf16>
    %cst_76 = arith.constant dense<0.000000e+00> : vector<8x4xf32>
    %144 = tpu.matmul %143, %134, %cst_76 {dimension_numbers = #tpu.dot_dimension_numbers<[1], [0], [0], [1], [0, 0, 1, 1], [], []>} : vector<8x8xbf16>, vector<8x4xbf16>, vector<8x4xf32> -> vector<8x4xf32>
    %145 = tpu.reciprocal %142 {approx = true} : vector<8x1xf32> -> vector<8x1xf32>
    %146 = vector.broadcast %145 : vector<8x1xf32> to vector<8x4xf32>
    %147 = arith.mulf %144, %146 : vector<8x4xf32>
    %148 = arith.truncf %147 : vector<8x4xf32> to vector<8x4xbf16>
    %c0_77 = arith.constant 0 : index
    %c28_78 = arith.constant 28 : index
    %149 = vector.load %arg7[%c0_77, %c28_78] : memref<8x32xbf16, #tpu.memory_space<vmem>>, vector<8x4xbf16>
    tpu.vector_store %arg7[%c0_77, %c28_78], %148 {strides = array<i32>} : memref<8x32xbf16, #tpu.memory_space<vmem>>, vector<8x4xbf16>,
    %c0_79 = arith.constant 0 : index
    %c0_80 = arith.constant 0 : index
    %150 = vector.load %arg7[%c0_79, %c0_80] : memref<8x32xbf16, #tpu.memory_space<vmem>>, vector<8x32xbf16>
    %c0_81 = arith.constant 0 : index
    %c0_82 = arith.constant 0 : index
    %151 = vector.load %arg3[%c0_81, %c0_82] : memref<32x32xbf16, #tpu.memory_space<vmem>>, vector<32x32xbf16>
    %cst_83 = arith.constant dense<0.000000e+00> : vector<8x32xf32>
    %152 = tpu.matmul %150, %151, %cst_83 {dimension_numbers = #tpu.dot_dimension_numbers<[1], [0], [0], [1], [0, 0, 1, 1], [], []>} : vector<8x32xbf16>, vector<32x32xbf16>, vector<8x32xf32> -> vector<8x32xf32>
    %c0_84 = arith.constant 0 : index
    %c0_85 = arith.constant 0 : index
    %153 = vector.load %arg4[%c0_84, %c0_85] : memref<1x32xf32, #tpu.memory_space<vmem>>, vector<1x32xf32>
    %154 = vector.broadcast %153 : vector<1x32xf32> to vector<8x32xf32>
    %155 = arith.addf %152, %154 : vector<8x32xf32>
    %c0_86 = arith.constant 0 : index
    %c0_87 = arith.constant 0 : index
    %c0_88 = arith.constant 0 : index
    %156 = vector.load %arg5[%c0_86, %c0_87, %c0_88] : memref<1x8x32xf32, #tpu.memory_space<vmem>>, vector<1x8x32xf32>
    %157 = vector.shape_cast %156 : vector<1x8x32xf32> to vector<8x32xf32>
    %158 = vector.shape_cast %155 : vector<8x32xf32> to vector<1x8x32xf32>
    tpu.vector_store %arg5[%c0_86, %c0_87, %c0_88], %158 {strides = array<i32>} : memref<1x8x32xf32, #tpu.memory_space<vmem>>, vector<1x8x32xf32>,
    return
  }
  func.func @transform_0(%arg0: i32) -> (i32, i32, i32) {
    %c0_i32 = arith.constant 0 : i32
    %c0_i32_0 = arith.constant 0 : i32
    %c0_i32_1 = arith.constant 0 : i32
    return %arg0, %c0_i32, %c0_i32_0 : i32, i32, i32
  }
  func.func @transform_1(%arg0: i32) -> (i32, i32) {
    %c0_i32 = arith.constant 0 : i32
    %c0_i32_0 = arith.constant 0 : i32
    %c0_i32_1 = arith.constant 0 : i32
    return %c0_i32, %c0_i32_0 : i32, i32
  }
  func.func @transform_2(%arg0: i32) -> (i32, i32) {
    %c0_i32 = arith.constant 0 : i32
    %c0_i32_0 = arith.constant 0 : i32
    %c0_i32_1 = arith.constant 0 : i32
    return %c0_i32, %c0_i32_0 : i32, i32
  }
  func.func @transform_3(%arg0: i32) -> (i32, i32) {
    %c0_i32 = arith.constant 0 : i32
    %c0_i32_0 = arith.constant 0 : i32
    %c0_i32_1 = arith.constant 0 : i32
    return %c0_i32, %c0_i32_0 : i32, i32
  }
  func.func @transform_4(%arg0: i32) -> (i32, i32, i32) {
    %c0_i32 = arith.constant 0 : i32
    %c0_i32_0 = arith.constant 0 : i32
    %c0_i32_1 = arith.constant 0 : i32
    return %arg0, %c0_i32, %c0_i32_0 : i32, i32, i32
  }
}

</mosaic_0001>

<llo_original>
// kernel: tpu_custom_call.1
$region0: #{tpu_custom_call.1}
  #allocation0 [shape = 'u32[]', space=smem, size = 0x4, offset = 0x4, fixed_abs, tag = 'smem constant byte address 0x4 - core index']
  #allocation1 [shape = 'u32[144,128]{1,0:T(1,128)}', space=vmem, size = 0x12000, scoped, tag = 'internal scratch']
  #allocation2 [shape = 'bf16[8,96]{1,0:T(8,128)(2,1)}', space=vmem, size = 0x800, scoped, tag = 'scratch operand']
  #allocation3 [shape = 'bf16[8,32]{1,0:T(8,128)(2,1)}', space=vmem, size = 0x800, scoped, tag = 'scratch operand']
  %s0 = inlined_call_operand.hbm [shape: bf16[2,8,32], index: 0, kind: input, shape index: {}]
  %s1 = inlined_call_operand.hbm [shape: bf16[32,96], index: 1, kind: input, shape index: {}]
  %s2 = inlined_call_operand.hbm [shape: bf16[32,32], index: 2, kind: input, shape index: {}]
  %s3 = inlined_call_operand.vmem [shape: f32[1,32], index: 3, kind: input, shape index: {}]
  %s4 = inlined_call_operand.hbm [shape: f32[2,8,32], index: 4, kind: output, shape index: {}]
  %s5 = sld [smem:[#allocation0]]
  $region61: #{tpu_custom_call.1} parent=0
    _
  %s7 = ssub.s32 1, %s5
  %s8 = scalar_select 0, %s7, %s5
  $region1: #{tpu_custom_call.1} parent=0
    #allocation4 [shape = 'u8[4096]{0}', space=vmem, size = 0x1000, scoped, tag = 'input window, operand 0']
    #allocation5 [shape = 's32[2]{0}', space=sflag, size = 0x8, scoped, tag = 'scoped memory for tpu_custom_call.1']
    #allocation6 [shape = 's32[2]{0}', space=sflag, size = 0x8, scoped, tag = 'scoped memory for tpu_custom_call.1']
    #allocation7 [shape = 'u8[8192]{0}', space=vmem, size = 0x2000, scoped, tag = 'input window, operand 1, single buffered']
    #allocation8 [shape = 's32[1]{0}', space=sflag, size = 0x4, scoped, tag = 'scoped memory for tpu_custom_call.1']
    #allocation9 [shape = 'u8[8192]{0}', space=vmem, size = 0x2000, scoped, tag = 'input window, operand 2, single buffered']
    #allocation10 [shape = 'u8[8192]{0}', space=vmem, size = 0x2000, scoped, tag = 'output window, operand 0']
    %9 = vsyncpa [#allocation5], 0
    %s10 = scalar_lea.sflag [#allocation5], 1
    %11 = vsyncpa %s10, 0
    %12 = vsyncpa [#allocation8], 0
    %13 = vsyncpa [#allocation6], 0
    %s14 = scalar_lea.sflag [#allocation6], 1
    %15 = vsyncpa %s14, 0
    loop: start=0, step=1, limit=4
    $region2: #{tpu_custom_call.1} parent=1 // loop_pre_header
      _
    $region3: #{tpu_custom_call.1} parent=1 // loop_header
      %s17 = sphi 0, %s21
      %p18 = scmp.ge.s32.totalorder %s17, 4
      %s27 = sphi 0, %s29
      %s30 = sphi 0, %s27
      %s31 = sphi 0, %s30
      %s47 = sphi 0, %s31
      %s51 = sphi 0, %s51
      %s53 = sphi 0, %s51
      %s54 = sphi 0, %s53
      %s68 = sphi 0, %s54
      %s72 = sphi 0, %s72
      %s74 = sphi 0, %s72
      %s75 = sphi 0, %s74
      %s89 = sphi 0, %s75
      %s93 = sphi 0, %s93
      %s95 = sphi 0, %s93
      %s96 = sphi 0, %s95
      %s110 = sphi 0, %s96
      %s116 = sphi 0, %s118
      %s119 = sphi 0, %s116
      %s120 = sphi 0, %s119
      %s136 = sphi 0, %s120
    $region4: #{tpu_custom_call.1} parent=1 // loop_header_branch
      %20 = sbr.rel (%p18) target = $region8
    $region5: #{tpu_custom_call.1} parent=1 // loop_body
      %s22 = ssub.s32 %s17, 1
      %s23 = ssub.s32 %s17, 2
      %s24 = sadd.s32 %s17, 1
      %s25 = ssub.s32 %s17, %s24
      %p26 = scmp.eq.s32.totalorder %s25, 0
      %s28 = sadd.s32 %s27, 1
      %s29 = scalar_select %p26, %s27, %s28
      %p32 = pneg %p26
      %p33 = scmp.eq.s32.totalorder %s17, 1
      %p34 = por %p32, %p33
      %p35 = scmp.ne.s32.totalorder %s27, %s30
      %p36 = scmp.eq.s32.totalorder %s17, 0
      %p37 = por %p35, %p36
      %p38 = scmp.ne.s32.totalorder %s27, %s30
      %p39 = scmp.eq.s32.totalorder %s22, 1
      %p40 = por %p38, %p39
      %p41 = scmp.ne.s32.totalorder %s30, %s31
      %p42 = scmp.eq.s32.totalorder %s22, 0
      %p43 = por %p41, %p42
      %p44 = scmp.ne.s32.totalorder %s30, %s31
      %p45 = scmp.eq.s32.totalorder %s23, 1
      %p46 = por %p44, %p45
      %p48 = scmp.ne.s32.totalorder %s31, %s47
      %p49 = scmp.eq.s32.totalorder %s23, 0
      %p50 = por %p48, %p49
      %s52 = sadd.s32 %s51, 1
      %p55 = scmp.eq.s32.totalorder %s17, 1
      %p56 = scmp.ne.s32.totalorder %s51, %s53
      %p57 = scmp.eq.s32.totalorder %s17, 0
      %p58 = por %p56, %p57
      %p59 = scmp.ne.s32.totalorder %s51, %s53
      %p60 = scmp.eq.s32.totalorder %s22, 1
      %p61 = por %p59, %p60
      %p62 = scmp.ne.s32.totalorder %s53, %s54
      %p63 = scmp.eq.s32.totalorder %s22, 0
      %p64 = por %p62, %p63
      %p65 = scmp.ne.s32.totalorder %s53, %s54
      %p66 = scmp.eq.s32.totalorder %s23, 1
      %p67 = por %p65, %p66
      %p69 = scmp.ne.s32.totalorder %s54, %s68
      %p70 = scmp.eq.s32.totalorder %s23, 0
      %p71 = por %p69, %p70
      %s73 = sadd.s32 %s72, 1
      %p76 = scmp.eq.s32.totalorder %s17, 1
      %p77 = scmp.ne.s32.totalorder %s72, %s74
      %p78 = scmp.eq.s32.totalorder %s17, 0
      %p79 = por %p77, %p78
      %p80 = scmp.ne.s32.totalorder %s72, %s74
      %p81 = scmp.eq.s32.totalorder %s22, 1
      %p82 = por %p80, %p81
      %p83 = scmp.ne.s32.totalorder %s74, %s75
      %p84 = scmp.eq.s32.totalorder %s22, 0
      %p85 = por %p83, %p84
      %p86 = scmp.ne.s32.totalorder %s74, %s75
      %p87 = scmp.eq.s32.totalorder %s23, 1
      %p88 = por %p86, %p87
      %p90 = scmp.ne.s32.totalorder %s75, %s89
      %p91 = scmp.eq.s32.totalorder %s23, 0
      %p92 = por %p90, %p91
      %s94 = sadd.s32 %s93, 1
      %p97 = scmp.eq.s32.totalorder %s17, 1
      %p98 = scmp.ne.s32.totalorder %s93, %s95
      %p99 = scmp.eq.s32.totalorder %s17, 0
      %p100 = por %p98, %p99
      %p101 = scmp.ne.s32.totalorder %s93, %s95
      %p102 = scmp.eq.s32.totalorder %s22, 1
      %p103 = por %p101, %p102
      %p104 = scmp.ne.s32.totalorder %s95, %s96
      %p105 = scmp.eq.s32.totalorder %s22, 0
      %p106 = por %p104, %p105
      %p107 = scmp.ne.s32.totalorder %s95, %s96
      %p108 = scmp.eq.s32.totalorder %s23, 1
      %p109 = por %p107, %p108
      %p111 = scmp.ne.s32.totalorder %s96, %s110
      %p112 = scmp.eq.s32.totalorder %s23, 0
      %p113 = por %p111, %p112
      %s114 = ssub.s32 %s17, %s24
      %p115 = scmp.eq.s32.totalorder %s114, 0
      %s117 = sadd.s32 %s116, 1
      %s118 = scalar_select %p115, %s116, %s117
      %p121 = pneg %p115
      %p122 = scmp.eq.s32.totalorder %s17, 1
      %p123 = por %p121, %p122
      %p124 = scmp.ne.s32.totalorder %s116, %s119
      %p125 = scmp.eq.s32.totalorder %s17, 0
      %p126 = por %p124, %p125
      %p127 = scmp.ne.s32.totalorder %s116, %s119
      %p128 = scmp.eq.s32.totalorder %s22, 1
      %p129 = por %p127, %p128
      %p130 = scmp.ne.s32.totalorder %s119, %s120
      %p131 = scmp.eq.s32.totalorder %s22, 0
      %p132 = por %p130, %p131
      %p133 = scmp.ne.s32.totalorder %s119, %s120
      %p134 = scmp.eq.s32.totalorder %s23, 1
      %p135 = por %p133, %p134
      %p137 = scmp.ne.s32.totalorder %s120, %s136
      %p138 = scmp.eq.s32.totalorder %s23, 0
      %p139 = por %p137, %p138
      %p140 = scmp.le.s32.totalorder 1, %s17
      %p141 = scmp.lt.s32.totalorder %s17, 3
      %p142 = pnand %p140, %p141
      %p143 = pneg %p142
      // Predicated region
      $region9: #{tpu_custom_call.1} parent=5 // pred_check
        _
      $region10: #{tpu_custom_call.1} parent=5 // pred_check_branch
        %145 = sbr.rel (%p142) target = $region12
      $region11: #{tpu_custom_call.1} parent=5 // pred_region
        %s146 = ssub.s32 %s17, 1
        // Predicated region
        $region13: #{tpu_custom_call.1} parent=11 // pred_check
          %p147 = pneg %p64
        $region14: #{tpu_custom_call.1} parent=11 // pred_check_branch
          %149 = sbr.rel (%p147) target = $region16
        $region15: #{tpu_custom_call.1} parent=11 // pred_region
          %s151 = ssub.s32 256, 256
          %152 = vsyncadd [#allocation8], %s151
          %s153 = sshll.u32 [#allocation7], 4
          %s154 = int_to_ptr.vmem [resolvable:$true] %s153
          %159 = dma.hbm_to_vmem [thread:$0]  %s1, 256, %s154, [#allocation8], 64, 64, 4
        $region16: #{tpu_custom_call.1} parent=11 // pred_fallthru
          _
        // Predicated region
        $region17: #{tpu_custom_call.1} parent=11 // pred_check
          %p160 = pneg %p85
        $region18: #{tpu_custom_call.1} parent=11 // pred_check_branch
          %162 = sbr.rel (%p160) target = $region20
        $region19: #{tpu_custom_call.1} parent=11 // pred_region
          %s164 = ssub.s32 256, 256
          %165 = vsyncadd [#allocation8], %s164
          %s166 = sshll.u32 [#allocation9], 4
          %s167 = int_to_ptr.vmem [resolvable:$true] %s166
          %172 = dma.hbm_to_vmem [thread:$0]  %s2, 256, %s167, [#allocation8], 64, 64, 4
        $region20: #{tpu_custom_call.1} parent=11 // pred_fallthru
          _
        // Predicated region
        $region21: #{tpu_custom_call.1} parent=11 // pred_check
          %p173 = pneg %p106
        $region22: #{tpu_custom_call.1} parent=11 // pred_check_branch
          %175 = sbr.rel (%p173) target = $region24
        $region23: #{tpu_custom_call.1} parent=11 // pred_region
          _
        $region24: #{tpu_custom_call.1} parent=11 // pred_fallthru
          _
      $region12: #{tpu_custom_call.1} parent=5 // pred_fallthru
        _
      %p176 = scmp.lt.s32.totalorder %s17, 2
      // Predicated region
      $region25: #{tpu_custom_call.1} parent=5 // pred_check
        %p177 = pneg %p176
      $region26: #{tpu_custom_call.1} parent=5 // pred_check_branch
        %179 = sbr.rel (%p177) target = $region28
      $region27: #{tpu_custom_call.1} parent=5 // pred_region
        // Predicated region
        $region29: #{tpu_custom_call.1} parent=27 // pred_check
          %p180 = pneg %p37
        $region30: #{tpu_custom_call.1} parent=27 // pred_check_branch
          %182 = sbr.rel (%p180) target = $region32
        $region31: #{tpu_custom_call.1} parent=27 // pred_region
          %s183 = sand.u32 %s27, 1
          %s184 = scalar_lea.sflag [#allocation5], %s183
          %s185 = sand.u32 %s27, 1
          %s186 = smul.addr %s185, 4
          %s187 = scalar_lea.vmem [#allocation4], %s186
          %s189 = ssub.s32 64, 64
          %190 = vsyncadd %s184, %s189
          %s191 = smul.addr %s17, 64
          %s192 = scalar_lea.hbm %s0, %s191
          %s194 = sshll.u32 %s187, 4
          %s195 = int_to_ptr.vmem [resolvable:$true] %s194
          %197 = dma.hbm_to_vmem [thread:$0]  %s192, 64, %s195, %s184
        $region32: #{tpu_custom_call.1} parent=27 // pred_fallthru
          _
      $region28: #{tpu_custom_call.1} parent=5 // pred_fallthru
        _
      %p198 = scmp.le.s32.totalorder 1, %s17
      %p199 = scmp.lt.s32.totalorder %s17, 3
      %p200 = pnand %p198, %p199
      %p201 = pneg %p200
      // Predicated region
      $region33: #{tpu_custom_call.1} parent=5 // pred_check
        _
      $region34: #{tpu_custom_call.1} parent=5 // pred_check_branch
        %203 = sbr.rel (%p200) target = $region36
      $region35: #{tpu_custom_call.1} parent=5 // pred_region
        %s204 = ssub.s32 %s17, 1
        %s205 = sand.u32 %s30, 1
        %s206 = scalar_lea.sflag [#allocation5], %s205
        %s207 = sand.u32 %s30, 1
        %s208 = smul.addr %s207, 4
        %s209 = scalar_lea.vmem [#allocation4], %s208
        // Predicated region
        $region37: #{tpu_custom_call.1} parent=35 // pred_check
          %p210 = pneg %p43
        $region38: #{tpu_custom_call.1} parent=35 // pred_check_branch
          %212 = sbr.rel (%p210) target = $region40
        $region39: #{tpu_custom_call.1} parent=35 // pred_region
          %213 = dma.done %s206, 64
        $region40: #{tpu_custom_call.1} parent=35 // pred_fallthru
          _
        // Predicated region
        $region41: #{tpu_custom_call.1} parent=35 // pred_check
          %p214 = pneg %p64
        $region42: #{tpu_custom_call.1} parent=35 // pred_check_branch
          %216 = sbr.rel (%p214) target = $region44
        $region43: #{tpu_custom_call.1} parent=35 // pred_region
          %217 = dma.done [#allocation8], 256
        $region44: #{tpu_custom_call.1} parent=35 // pred_fallthru
          _
        // Predicated region
        $region45: #{tpu_custom_call.1} parent=35 // pred_check
          %p218 = pneg %p85
        $region46: #{tpu_custom_call.1} parent=35 // pred_check_branch
          %220 = sbr.rel (%p218) target = $region48
        $region47: #{tpu_custom_call.1} parent=35 // pred_region
          %221 = dma.done [#allocation8], 256
        $region48: #{tpu_custom_call.1} parent=35 // pred_fallthru
          _
        %s222 = sand.u32 %s30, 1
        %s223 = scalar_lea.sflag [#allocation5], %s222
        %s224 = sand.u32 %s30, 1
        %s225 = smul.addr %s224, 4
        %s226 = scalar_lea.vmem [#allocation4], %s225
        %p227 = pneg %p43
        %p228 = pneg %p40
        %p229 = pneg %p64
        %p230 = pneg %p61
        %p231 = pneg %p85
        %p232 = pneg %p82
        %p233 = pneg %p106
        %p234 = pneg %p103
        %p235 = pneg %p132
        %p236 = pneg %p129
        %s237 = sand.u32 %s119, 1
        %s238 = scalar_lea.sflag [#allocation6], %s237
        %s239 = sand.u32 %s119, 1
        %s240 = smul.addr %s239, 8
        %s241 = scalar_lea.vmem [#allocation10], %s240
        %v243 = vld [vmem:[%s209] sm:$0xf]
        %v244 = vld [vmem:[#allocation7] sm:$0xf]
        %v245 = vld [vmem:[#allocation7 + $0x4] sm:$0xf]
        %v246 = vld [vmem:[#allocation7 + $0x8] sm:$0xf]
        %v247 = vld [vmem:[#allocation7 + $0xc] sm:$0xf]
        %v252 = vunpack.c.l.b16 %v244
        %v253 = vunpack.c.l.b16 %v245
        %v254 = vunpack.c.l.b16 %v246
        %v255 = vunpack.c.l.b16 %v247
        %v256 = vpack.c.b16 %v253, %v252
        %v257 = vpack.c.b16 %v255, %v254
        %vm260 = vcmask 261120
        %v262 = vsel %vm260, %v243, 0
        %264 = vmatprep.subr.bf16.mxu0 0
        %265 = vmatpush1.bf16.msra.mxu0 0
        %266 = vmatprep.subr.bf16.mxu0 0
        %267 = vmatpush1.bf16.msra.mxu0 0
        %268 = vmatprep.subr.bf16.mxu0 0
        %269 = vmatpush1.bf16.msra.mxu0 0
        %270 = vmatprep.subr.bf16.mxu0 0
        %271 = vmatpush1.bf16.msra.mxu0 0
        %272 = vmatprep.subr.bf16.mxu0 0
        %273 = vmatpush1.bf16.msra.mxu0 0
        %274 = vmatprep.subr.bf16.mxu0 0
        %275 = vmatpush1.bf16.msra.mxu0 0
        %276 = vmatprep.subr.bf16.mxu0 0
        %277 = vmatpush1.bf16.msra.mxu0 %v257
        %278 = vmatprep.subr.bf16.mxu0 0
        %279 = vmatpush1.bf16.msra.mxu0 %v256
        %280 = vmatprep.subr.bf16.mxu0 0
        %281 = vmatpush2.bf16.msra.mxu0 0
        %282 = vmatprep.subr.bf16.mxu0 0
        %283 = vmatpush2.bf16.msra.mxu0 0
        %284 = vmatprep.subr.bf16.mxu0 0
        %285 = vmatpush2.bf16.msra.mxu0 0
        %286 = vmatprep.subr.bf16.mxu0 0
        %287 = vmatpush2.bf16.msra.mxu0 0
        %288 = vmatprep.subr.bf16.mxu0 0
        %289 = vmatpush2.bf16.msra.mxu0 0
        %290 = vmatprep.subr.bf16.mxu0 0
        %291 = vmatpush2.bf16.msra.mxu0 0
        %292 = vmatprep.subr.bf16.mxu0 0
        %293 = vmatpush2.bf16.msra.mxu0 0
        %294 = vmatprep.subr.bf16.mxu0 0
        %295 = vmatpush2.bf16.msra.mxu0 0
        %296 = vmatprep.mubr.bf16.mxu0 0
        %297 = vmatmul.mubr.bf16.gmra.mxu0 %v262
        %v298 = vpop.f32.mrf.mxu0
        %v299 = vadd.f32 0.0, %v298
        %v300 = vpop.f32.mrf.mxu0
        %v301 = vpop.f32.mrf.mxu0
        %v302 = vpop.f32.mrf.mxu0
        %303 = vdwg.mxu0
        %v304 = vpack.c.bf16 %v299, %v299
        %vm305 = vcmask 781312
        %306 = vst.msk [vmem:[#allocation2] sm:$0xf] %vm305, %v304
        %v307 = vld [vmem:[#allocation2] sm:$0xf]
        %v309 = vunpack.c.l.b16 %v307
        %v310 = vpack.c.b16 %v309, %v309
        %311 = vrot.lane.b32.xlu0 %v310, 96
        %v312 = vpop.permute.xlu0 %311
        %vm313 = vcmask 31744
        %v315 = vsel %vm313, %v307, 0
        %v318 = vsel %vm313, %v312, 0
        %320 = vmatprep.subr.bf16.mxu0 0
        %321 = vmatpush1.bf16.xpose.msra.mxu0 0
        %322 = vmatprep.subr.bf16.mxu0 0
        %323 = vmatpush1.bf16.xpose.msra.mxu0 0
        %324 = vmatprep.subr.bf16.mxu0 0
        %325 = vmatpush1.bf16.xpose.msra.mxu0 0
        %326 = vmatprep.subr.bf16.mxu0 0
        %327 = vmatpush1.bf16.xpose.msra.mxu0 0
        %328 = vmatprep.subr.bf16.mxu0 0
        %329 = vmatpush1.bf16.xpose.msra.mxu0 0
        %330 = vmatprep.subr.bf16.mxu0 0
        %331 = vmatpush1.bf16.xpose.msra.mxu0 0
        %332 = vmatprep.subr.bf16.mxu0 0
        %333 = vmatpush1.bf16.xpose.msra.mxu0 0
        %334 = vmatprep.subr.bf16.mxu0 0
        %335 = vmatpush1.bf16.xpose.msra.mxu0 %v318
        %336 = vmatprep.subr.bf16.mxu0 0
        %337 = vmatpush2.bf16.xpose.msra.mxu0 0
        %338 = vmatprep.subr.bf16.mxu0 0
        %339 = vmatpush2.bf16.xpose.msra.mxu0 0
        %340 = vmatprep.subr.bf16.mxu0 0
        %341 = vmatpush2.bf16.xpose.msra.mxu0 0
        %342 = vmatprep.subr.bf16.mxu0 0
        %343 = vmatpush2.bf16.xpose.msra.mxu0 0
        %344 = vmatprep.subr.bf16.mxu0 0
        %345 = vmatpush2.bf16.xpose.msra.mxu0 0
        %346 = vmatprep.subr.bf16.mxu0 0
        %347 = vmatpush2.bf16.xpose.msra.mxu0 0
        %348 = vmatprep.subr.bf16.mxu0 0
        %349 = vmatpush2.bf16.xpose.msra.mxu0 0
        %350 = vmatprep.subr.bf16.mxu0 0
        %351 = vmatpush2.bf16.xpose.msra.mxu0 0
        %352 = vmatprep.mubr.bf16.mxu0 0
        %353 = vmatmul.mubr.bf16.gmra.mxu0 %v315
        %v354 = vpop.f32.mrf.mxu0
        %v355 = vadd.f32 0.0, %v354
        %v356 = vpop.f32.mrf.mxu0
        %v357 = vpop.f32.mrf.mxu0
        %v358 = vpop.f32.mrf.mxu0
        %359 = vdwg.mxu0
        %vm360 = vcmask 64512
        %v361 = vsel %vm360, %v355, -inf
        %362 = vmax.xlane.f32.xlu0 %v361
        %v363 = vpop.xlane.xlu0 %362
        %v364 = vsub.f32 %v355, %v363
        %v365 = vmul.f32 %v364, 1.442695
        %v366 = vpow.pop %v365
        %v367 = vsel %vm360, %v366, 0.0
        %368 = vadd.xlane.f32.xlu0 %v367
        %v369 = vpop.xlane.xlu0 %368
        %v370 = vpack.c.bf16 %v366, %v366
        %371 = vrot.lane.b32.xlu0 %v310, 64
        %v372 = vpop.permute.xlu0 %371
        %v374 = vsel %vm360, %v370, 0
        %vm376 = vcmask 1043456
        %v378 = vsel %vm376, %v372, 0
        %380 = vmatprep.subr.bf16.mxu0 0
        %381 = vmatpush1.bf16.msra.mxu0 0
        %382 = vmatprep.subr.bf16.mxu0 0
        %383 = vmatpush1.bf16.msra.mxu0 0
        %384 = vmatprep.subr.bf16.mxu0 0
        %385 = vmatpush1.bf16.msra.mxu0 0
        %386 = vmatprep.subr.bf16.mxu0 0
        %387 = vmatpush1.bf16.msra.mxu0 0
        %388 = vmatprep.subr.bf16.mxu0 0
        %389 = vmatpush1.bf16.msra.mxu0 0
        %390 = vmatprep.subr.bf16.mxu0 0
        %391 = vmatpush1.bf16.msra.mxu0 0
        %392 = vmatprep.subr.bf16.mxu0 0
        %393 = vmatpush1.bf16.msra.mxu0 0
        %394 = vmatprep.subr.bf16.mxu0 0
        %395 = vmatpush1.bf16.msra.mxu0 %v378
        %396 = vmatprep.subr.bf16.mxu0 0
        %397 = vmatpush2.bf16.msra.mxu0 0
        %398 = vmatprep.subr.bf16.mxu0 0
        %399 = vmatpush2.bf16.msra.mxu0 0
        %400 = vmatprep.subr.bf16.mxu0 0
        %401 = vmatpush2.bf16.msra.mxu0 0
        %402 = vmatprep.subr.bf16.mxu0 0
        %403 = vmatpush2.bf16.msra.mxu0 0
        %404 = vmatprep.subr.bf16.mxu0 0
        %405 = vmatpush2.bf16.msra.mxu0 0
        %406 = vmatprep.subr.bf16.mxu0 0
        %407 = vmatpush2.bf16.msra.mxu0 0
        %408 = vmatprep.subr.bf16.mxu0 0
        %409 = vmatpush2.bf16.msra.mxu0 0
        %410 = vmatprep.subr.bf16.mxu0 0
        %411 = vmatpush2.bf16.msra.mxu0 0
        %412 = vmatprep.mubr.bf16.mxu0 0
        %413 = vmatmul.mubr.bf16.gmra.mxu0 %v374
        %v414 = vpop.f32.mrf.mxu0
        %v415 = vadd.f32 0.0, %v414
        %v416 = vpop.f32.mrf.mxu0
        %v417 = vpop.f32.mrf.mxu0
        %v418 = vpop.f32.mrf.mxu0
        %419 = vdwg.mxu0
        %v420 = vrcp.pop %v369
        %v421 = vmul.f32 %v415, %v420
        %v422 = vpack.c.bf16 %v421, %v421
        %vm423 = vcmask 27648
        %424 = vst.msk [vmem:[#allocation3] sm:$0xf] %vm423, %v422
        %v425 = vld [vmem:[#allocation2] sm:$0xf]
        %v427 = vunpack.c.l.b16 %v425
        %v428 = vpack.c.b16 %v427, %v427
        %429 = vrot.lane.b32.xlu0 %v428, 124
        %v430 = vpop.permute.xlu0 %429
        %431 = vrot.lane.b32.xlu0 %v428, 92
        %v432 = vpop.permute.xlu0 %431
        %v434 = vsel %vm313, %v430, 0
        %v437 = vsel %vm313, %v432, 0
        %439 = vmatprep.subr.bf16.mxu0 0
        %440 = vmatpush1.bf16.xpose.msra.mxu0 0
        %441 = vmatprep.subr.bf16.mxu0 0
        %442 = vmatpush1.bf16.xpose.msra.mxu0 0
        %443 = vmatprep.subr.bf16.mxu0 0
        %444 = vmatpush1.bf16.xpose.msra.mxu0 0
        %445 = vmatprep.subr.bf16.mxu0 0
        %446 = vmatpush1.bf16.xpose.msra.mxu0 0
        %447 = vmatprep.subr.bf16.mxu0 0
        %448 = vmatpush1.bf16.xpose.msra.mxu0 0
        %449 = vmatprep.subr.bf16.mxu0 0
        %450 = vmatpush1.bf16.xpose.msra.mxu0 0
        %451 = vmatprep.subr.bf16.mxu0 0
        %452 = vmatpush1.bf16.xpose.msra.mxu0 0
        %453 = vmatprep.subr.bf16.mxu0 0
        %454 = vmatpush1.bf16.xpose.msra.mxu0 %v437
        %455 = vmatprep.subr.bf16.mxu0 0
        %456 = vmatpush2.bf16.xpose.msra.mxu0 0
        %457 = vmatprep.subr.bf16.mxu0 0
        %458 = vmatpush2.bf16.xpose.msra.mxu0 0
        %459 = vmatprep.subr.bf16.mxu0 0
        %460 = vmatpush2.bf16.xpose.msra.mxu0 0
        %461 = vmatprep.subr.bf16.mxu0 0
        %462 = vmatpush2.bf16.xpose.msra.mxu0 0
        %463 = vmatprep.subr.bf16.mxu0 0
        %464 = vmatpush2.bf16.xpose.msra.mxu0 0
        %465 = vmatprep.subr.bf16.mxu0 0
        %466 = vmatpush2.bf16.xpose.msra.mxu0 0
        %467 = vmatprep.subr.bf16.mxu0 0
        %468 = vmatpush2.bf16.xpose.msra.mxu0 0
        %469 = vmatprep.subr.bf16.mxu0 0
        %470 = vmatpush2.bf16.xpose.msra.mxu0 0
        %471 = vmatprep.mubr.bf16.mxu0 0
        %472 = vmatmul.mubr.bf16.gmra.mxu0 %v434
        %v473 = vpop.f32.mrf.mxu0
        %v474 = vadd.f32 0.0, %v473
        %v475 = vpop.f32.mrf.mxu0
        %v476 = vpop.f32.mrf.mxu0
        %v477 = vpop.f32.mrf.mxu0
        %478 = vdwg.mxu0
        %v479 = vsel %vm360, %v474, -inf
        %480 = vmax.xlane.f32.xlu0 %v479
        %v481 = vpop.xlane.xlu0 %480
        %v482 = vsub.f32 %v474, %v481
        %v483 = vmul.f32 %v482, 1.442695
        %v484 = vpow.pop %v483
        %v485 = vsel %vm360, %v484, 0.0
        %486 = vadd.xlane.f32.xlu0 %v485
        %v487 = vpop.xlane.xlu0 %486
        %v488 = vpack.c.bf16 %v484, %v484
        %489 = vrot.lane.b32.xlu0 %v428, 60
        %v490 = vpop.permute.xlu0 %489
        %v492 = vsel %vm360, %v488, 0
        %v495 = vsel %vm376, %v490, 0
        %497 = vmatprep.subr.bf16.mxu0 0
        %498 = vmatpush1.bf16.msra.mxu0 0
        %499 = vmatprep.subr.bf16.mxu0 0
        %500 = vmatpush1.bf16.msra.mxu0 0
        %501 = vmatprep.subr.bf16.mxu0 0
        %502 = vmatpush1.bf16.msra.mxu0 0
        %503 = vmatprep.subr.bf16.mxu0 0
        %504 = vmatpush1.bf16.msra.mxu0 0
        %505 = vmatprep.subr.bf16.mxu0 0
        %506 = vmatpush1.bf16.msra.mxu0 0
        %507 = vmatprep.subr.bf16.mxu0 0
        %508 = vmatpush1.bf16.msra.mxu0 0
        %509 = vmatprep.subr.bf16.mxu0 0
        %510 = vmatpush1.bf16.msra.mxu0 0
        %511 = vmatprep.subr.bf16.mxu0 0
        %512 = vmatpush1.bf16.msra.mxu0 %v495
        %513 = vmatprep.subr.bf16.mxu0 0
        %514 = vmatpush2.bf16.msra.mxu0 0
        %515 = vmatprep.subr.bf16.mxu0 0
        %516 = vmatpush2.bf16.msra.mxu0 0
        %517 = vmatprep.subr.bf16.mxu0 0
        %518 = vmatpush2.bf16.msra.mxu0 0
        %519 = vmatprep.subr.bf16.mxu0 0
        %520 = vmatpush2.bf16.msra.mxu0 0
        %521 = vmatprep.subr.bf16.mxu0 0
        %522 = vmatpush2.bf16.msra.mxu0 0
        %523 = vmatprep.subr.bf16.mxu0 0
        %524 = vmatpush2.bf16.msra.mxu0 0
        %525 = vmatprep.subr.bf16.mxu0 0
        %526 = vmatpush2.bf16.msra.mxu0 0
        %527 = vmatprep.subr.bf16.mxu0 0
        %528 = vmatpush2.bf16.msra.mxu0 0
        %529 = vmatprep.mubr.bf16.mxu0 0
        %530 = vmatmul.mubr.bf16.gmra.mxu0 %v492
        %v531 = vpop.f32.mrf.mxu0
        %v532 = vadd.f32 0.0, %v531
        %v533 = vpop.f32.mrf.mxu0
        %v534 = vpop.f32.mrf.mxu0
        %v535 = vpop.f32.mrf.mxu0
        %536 = vdwg.mxu0
        %v537 = vrcp.pop %v487
        %v538 = vmul.f32 %v532, %v537
        %v539 = vpack.c.bf16 %v538, %v538
        %v541 = vunpack.c.l.b16 %v539
        %v542 = vpack.c.b16 %v541, %v541
        %543 = vrot.lane.b32.xlu0 %v542, 4
        %v544 = vpop.permute.xlu0 %543
        %vm546 = vcmask 60448
        %547 = vst.msk [vmem:[#allocation3] sm:$0xf] %vm546, %v544
        %v548 = vld [vmem:[#allocation2] sm:$0xf]
        %v550 = vunpack.c.l.b16 %v548
        %v551 = vpack.c.b16 %v550, %v550
        %552 = vrot.lane.b32.xlu0 %v551, 120
        %v553 = vpop.permute.xlu0 %552
        %554 = vrot.lane.b32.xlu0 %v551, 88
        %v555 = vpop.permute.xlu0 %554
        %v557 = vsel %vm313, %v553, 0
        %v560 = vsel %vm313, %v555, 0
        %562 = vmatprep.subr.bf16.mxu0 0
        %563 = vmatpush1.bf16.xpose.msra.mxu0 0
        %564 = vmatprep.subr.bf16.mxu0 0
        %565 = vmatpush1.bf16.xpose.msra.mxu0 0
        %566 = vmatprep.subr.bf16.mxu0 0
        %567 = vmatpush1.bf16.xpose.msra.mxu0 0
        %568 = vmatprep.subr.bf16.mxu0 0
        %569 = vmatpush1.bf16.xpose.msra.mxu0 0
        %570 = vmatprep.subr.bf16.mxu0 0
        %571 = vmatpush1.bf16.xpose.msra.mxu0 0
        %572 = vmatprep.subr.bf16.mxu0 0
        %573 = vmatpush1.bf16.xpose.msra.mxu0 0
        %574 = vmatprep.subr.bf16.mxu0 0
        %575 = vmatpush1.bf16.xpose.msra.mxu0 0
        %576 = vmatprep.subr.bf16.mxu0 0
        %577 = vmatpush1.bf16.xpose.msra.mxu0 %v560
        %578 = vmatprep.subr.bf16.mxu0 0
        %579 = vmatpush2.bf16.xpose.msra.mxu0 0
        %580 = vmatprep.subr.bf16.mxu0 0
        %581 = vmatpush2.bf16.xpose.msra.mxu0 0
        %582 = vmatprep.subr.bf16.mxu0 0
        %583 = vmatpush2.bf16.xpose.msra.mxu0 0
        %584 = vmatprep.subr.bf16.mxu0 0
        %585 = vmatpush2.bf16.xpose.msra.mxu0 0
        %586 = vmatprep.subr.bf16.mxu0 0
        %587 = vmatpush2.bf16.xpose.msra.mxu0 0
        %588 = vmatprep.subr.bf16.mxu0 0
        %589 = vmatpush2.bf16.xpose.msra.mxu0 0
        %590 = vmatprep.subr.bf16.mxu0 0
        %591 = vmatpush2.bf16.xpose.msra.mxu0 0
        %592 = vmatprep.subr.bf16.mxu0 0
        %593 = vmatpush2.bf16.xpose.msra.mxu0 0
        %594 = vmatprep.mubr.bf16.mxu0 0
        %595 = vmatmul.mubr.bf16.gmra.mxu0 %v557
        %v596 = vpop.f32.mrf.mxu0
        %v597 = vadd.f32 0.0, %v596
        %v598 = vpop.f32.mrf.mxu0
        %v599 = vpop.f32.mrf.mxu0
        %v600 = vpop.f32.mrf.mxu0
        %601 = vdwg.mxu0
        %v602 = vsel %vm360, %v597, -inf
        %603 = vmax.xlane.f32.xlu0 %v602
        %v604 = vpop.xlane.xlu0 %603
        %v605 = vsub.f32 %v597, %v604
        %v606 = vmul.f32 %v605, 1.442695
        %v607 = vpow.pop %v606
        %v608 = vsel %vm360, %v607, 0.0
        %609 = vadd.xlane.f32.xlu0 %v608
        %v610 = vpop.xlane.xlu0 %609
        %v611 = vpack.c.bf16 %v607, %v607
        %612 = vrot.lane.b32.xlu0 %v551, 56
        %v613 = vpop.permute.xlu0 %612
        %v615 = vsel %vm360, %v611, 0
        %v618 = vsel %vm376, %v613, 0
        %620 = vmatprep.subr.bf16.mxu0 0
        %621 = vmatpush1.bf16.msra.mxu0 0
        %622 = vmatprep.subr.bf16.mxu0 0
        %623 = vmatpush1.bf16.msra.mxu0 0
        %624 = vmatprep.subr.bf16.mxu0 0
        %625 = vmatpush1.bf16.msra.mxu0 0
        %626 = vmatprep.subr.bf16.mxu0 0
        %627 = vmatpush1.bf16.msra.mxu0 0
        %628 = vmatprep.subr.bf16.mxu0 0
        %629 = vmatpush1.bf16.msra.mxu0 0
        %630 = vmatprep.subr.bf16.mxu0 0
        %631 = vmatpush1.bf16.msra.mxu0 0
        %632 = vmatprep.subr.bf16.mxu0 0
        %633 = vmatpush1.bf16.msra.mxu0 0
        %634 = vmatprep.subr.bf16.mxu0 0
        %635 = vmatpush1.bf16.msra.mxu0 %v618
        %636 = vmatprep.subr.bf16.mxu0 0
        %637 = vmatpush2.bf16.msra.mxu0 0
        %638 = vmatprep.subr.bf16.mxu0 0
        %639 = vmatpush2.bf16.msra.mxu0 0
        %640 = vmatprep.subr.bf16.mxu0 0
        %641 = vmatpush2.bf16.msra.mxu0 0
        %642 = vmatprep.subr.bf16.mxu0 0
        %643 = vmatpush2.bf16.msra.mxu0 0
        %644 = vmatprep.subr.bf16.mxu0 0
        %645 = vmatpush2.bf16.msra.mxu0 0
        %646 = vmatprep.subr.bf16.mxu0 0
        %647 = vmatpush2.bf16.msra.mxu0 0
        %648 = vmatprep.subr.bf16.mxu0 0
        %649 = vmatpush2.bf16.msra.mxu0 0
        %650 = vmatprep.subr.bf16.mxu0 0
        %651 = vmatpush2.bf16.msra.mxu0 0
        %652 = vmatprep.mubr.bf16.mxu0 0
        %653 = vmatmul.mubr.bf16.gmra.mxu0 %v615
        %v654 = vpop.f32.mrf.mxu0
        %v655 = vadd.f32 0.0, %v654
        %v656 = vpop.f32.mrf.mxu0
        %v657 = vpop.f32.mrf.mxu0
        %v658 = vpop.f32.mrf.mxu0
        %659 = vdwg.mxu0
        %v660 = vrcp.pop %v610
        %v661 = vmul.f32 %v655, %v660
        %v662 = vpack.c.bf16 %v661, %v661
        %v664 = vunpack.c.l.b16 %v662
        %v665 = vpack.c.b16 %v664, %v664
        %666 = vrot.lane.b32.xlu0 %v665, 8
        %v667 = vpop.permute.xlu0 %666
        %vm669 = vcmask 93248
        %670 = vst.msk [vmem:[#allocation3] sm:$0xf] %vm669, %v667
        %v671 = vld [vmem:[#allocation2] sm:$0xf]
        %v673 = vunpack.c.l.b16 %v671
        %v674 = vpack.c.b16 %v673, %v673
        %675 = vrot.lane.b32.xlu0 %v674, 116
        %v676 = vpop.permute.xlu0 %675
        %677 = vrot.lane.b32.xlu0 %v674, 84
        %v678 = vpop.permute.xlu0 %677
        %v680 = vsel %vm313, %v676, 0
        %v683 = vsel %vm313, %v678, 0
        %685 = vmatprep.subr.bf16.mxu0 0
        %686 = vmatpush1.bf16.xpose.msra.mxu0 0
        %687 = vmatprep.subr.bf16.mxu0 0
        %688 = vmatpush1.bf16.xpose.msra.mxu0 0
        %689 = vmatprep.subr.bf16.mxu0 0
        %690 = vmatpush1.bf16.xpose.msra.mxu0 0
        %691 = vmatprep.subr.bf16.mxu0 0
        %692 = vmatpush1.bf16.xpose.msra.mxu0 0
        %693 = vmatprep.subr.bf16.mxu0 0
        %694 = vmatpush1.bf16.xpose.msra.mxu0 0
        %695 = vmatprep.subr.bf16.mxu0 0
        %696 = vmatpush1.bf16.xpose.msra.mxu0 0
        %697 = vmatprep.subr.bf16.mxu0 0
        %698 = vmatpush1.bf16.xpose.msra.mxu0 0
        %699 = vmatprep.subr.bf16.mxu0 0
        %700 = vmatpush1.bf16.xpose.msra.mxu0 %v683
        %701 = vmatprep.subr.bf16.mxu0 0
        %702 = vmatpush2.bf16.xpose.msra.mxu0 0
        %703 = vmatprep.subr.bf16.mxu0 0
        %704 = vmatpush2.bf16.xpose.msra.mxu0 0
        %705 = vmatprep.subr.bf16.mxu0 0
        %706 = vmatpush2.bf16.xpose.msra.mxu0 0
        %707 = vmatprep.subr.bf16.mxu0 0
        %708 = vmatpush2.bf16.xpose.msra.mxu0 0
        %709 = vmatprep.subr.bf16.mxu0 0
        %710 = vmatpush2.bf16.xpose.msra.mxu0 0
        %711 = vmatprep.subr.bf16.mxu0 0
        %712 = vmatpush2.bf16.xpose.msra.mxu0 0
        %713 = vmatprep.subr.bf16.mxu0 0
        %714 = vmatpush2.bf16.xpose.msra.mxu0 0
        %715 = vmatprep.subr.bf16.mxu0 0
        %716 = vmatpush2.bf16.xpose.msra.mxu0 0
        %717 = vmatprep.mubr.bf16.mxu0 0
        %718 = vmatmul.mubr.bf16.gmra.mxu0 %v680
        %v719 = vpop.f32.mrf.mxu0
        %v720 = vadd.f32 0.0, %v719
        %v721 = vpop.f32.mrf.mxu0
        %v722 = vpop.f32.mrf.mxu0
        %v723 = vpop.f32.mrf.mxu0
        %724 = vdwg.mxu0
        %v725 = vsel %vm360, %v720, -inf
        %726 = vmax.xlane.f32.xlu0 %v725
        %v727 = vpop.xlane.xlu0 %726
        %v728 = vsub.f32 %v720, %v727
        %v729 = vmul.f32 %v728, 1.442695
        %v730 = vpow.pop %v729
        %v731 = vsel %vm360, %v730, 0.0
        %732 = vadd.xlane.f32.xlu0 %v731
        %v733 = vpop.xlane.xlu0 %732
        %v734 = vpack.c.bf16 %v730, %v730
        %735 = vrot.lane.b32.xlu0 %v674, 52
        %v736 = vpop.permute.xlu0 %735
        %v738 = vsel %vm360, %v734, 0
        %v741 = vsel %vm376, %v736, 0
        %743 = vmatprep.subr.bf16.mxu0 0
        %744 = vmatpush1.bf16.msra.mxu0 0
        %745 = vmatprep.subr.bf16.mxu0 0
        %746 = vmatpush1.bf16.msra.mxu0 0
        %747 = vmatprep.subr.bf16.mxu0 0
        %748 = vmatpush1.bf16.msra.mxu0 0
        %749 = vmatprep.subr.bf16.mxu0 0
        %750 = vmatpush1.bf16.msra.mxu0 0
        %751 = vmatprep.subr.bf16.mxu0 0
        %752 = vmatpush1.bf16.msra.mxu0 0
        %753 = vmatprep.subr.bf16.mxu0 0
        %754 = vmatpush1.bf16.msra.mxu0 0
        %755 = vmatprep.subr.bf16.mxu0 0
        %756 = vmatpush1.bf16.msra.mxu0 0
        %757 = vmatprep.subr.bf16.mxu0 0
        %758 = vmatpush1.bf16.msra.mxu0 %v741
        %759 = vmatprep.subr.bf16.mxu0 0
        %760 = vmatpush2.bf16.msra.mxu0 0
        %761 = vmatprep.subr.bf16.mxu0 0
        %762 = vmatpush2.bf16.msra.mxu0 0
        %763 = vmatprep.subr.bf16.mxu0 0
        %764 = vmatpush2.bf16.msra.mxu0 0
        %765 = vmatprep.subr.bf16.mxu0 0
        %766 = vmatpush2.bf16.msra.mxu0 0
        %767 = vmatprep.subr.bf16.mxu0 0
        %768 = vmatpush2.bf16.msra.mxu0 0
        %769 = vmatprep.subr.bf16.mxu0 0
        %770 = vmatpush2.bf16.msra.mxu0 0
        %771 = vmatprep.subr.bf16.mxu0 0
        %772 = vmatpush2.bf16.msra.mxu0 0
        %773 = vmatprep.subr.bf16.mxu0 0
        %774 = vmatpush2.bf16.msra.mxu0 0
        %775 = vmatprep.mubr.bf16.mxu0 0
        %776 = vmatmul.mubr.bf16.gmra.mxu0 %v738
        %v777 = vpop.f32.mrf.mxu0
        %v778 = vadd.f32 0.0, %v777
        %v779 = vpop.f32.mrf.mxu0
        %v780 = vpop.f32.mrf.mxu0
        %v781 = vpop.f32.mrf.mxu0
        %782 = vdwg.mxu0
        %v783 = vrcp.pop %v733
        %v784 = vmul.f32 %v778, %v783
        %v785 = vpack.c.bf16 %v784, %v784
        %v787 = vunpack.c.l.b16 %v785
        %v788 = vpack.c.b16 %v787, %v787
        %789 = vrot.lane.b32.xlu0 %v788, 12
        %v790 = vpop.permute.xlu0 %789
        %vm792 = vcmask 126048
        %793 = vst.msk [vmem:[#allocation3] sm:$0xf] %vm792, %v790
        %v794 = vld [vmem:[#allocation2] sm:$0xf]
        %v796 = vunpack.c.l.b16 %v794
        %v797 = vpack.c.b16 %v796, %v796
        %798 = vrot.lane.b32.xlu0 %v797, 112
        %v799 = vpop.permute.xlu0 %798
        %800 = vrot.lane.b32.xlu0 %v797, 80
        %v801 = vpop.permute.xlu0 %800
        %v803 = vsel %vm313, %v799, 0
        %v806 = vsel %vm313, %v801, 0
        %808 = vmatprep.subr.bf16.mxu0 0
        %809 = vmatpush1.bf16.xpose.msra.mxu0 0
        %810 = vmatprep.subr.bf16.mxu0 0
        %811 = vmatpush1.bf16.xpose.msra.mxu0 0
        %812 = vmatprep.subr.bf16.mxu0 0
        %813 = vmatpush1.bf16.xpose.msra.mxu0 0
        %814 = vmatprep.subr.bf16.mxu0 0
        %815 = vmatpush1.bf16.xpose.msra.mxu0 0
        %816 = vmatprep.subr.bf16.mxu0 0
        %817 = vmatpush1.bf16.xpose.msra.mxu0 0
        %818 = vmatprep.subr.bf16.mxu0 0
        %819 = vmatpush1.bf16.xpose.msra.mxu0 0
        %820 = vmatprep.subr.bf16.mxu0 0
        %821 = vmatpush1.bf16.xpose.msra.mxu0 0
        %822 = vmatprep.subr.bf16.mxu0 0
        %823 = vmatpush1.bf16.xpose.msra.mxu0 %v806
        %824 = vmatprep.subr.bf16.mxu0 0
        %825 = vmatpush2.bf16.xpose.msra.mxu0 0
        %826 = vmatprep.subr.bf16.mxu0 0
        %827 = vmatpush2.bf16.xpose.msra.mxu0 0
        %828 = vmatprep.subr.bf16.mxu0 0
        %829 = vmatpush2.bf16.xpose.msra.mxu0 0
        %830 = vmatprep.subr.bf16.mxu0 0
        %831 = vmatpush2.bf16.xpose.msra.mxu0 0
        %832 = vmatprep.subr.bf16.mxu0 0
        %833 = vmatpush2.bf16.xpose.msra.mxu0 0
        %834 = vmatprep.subr.bf16.mxu0 0
        %835 = vmatpush2.bf16.xpose.msra.mxu0 0
        %836 = vmatprep.subr.bf16.mxu0 0
        %837 = vmatpush2.bf16.xpose.msra.mxu0 0
        %838 = vmatprep.subr.bf16.mxu0 0
        %839 = vmatpush2.bf16.xpose.msra.mxu0 0
        %840 = vmatprep.mubr.bf16.mxu0 0
        %841 = vmatmul.mubr.bf16.gmra.mxu0 %v803
        %v842 = vpop.f32.mrf.mxu0
        %v843 = vadd.f32 0.0, %v842
        %v844 = vpop.f32.mrf.mxu0
        %v845 = vpop.f32.mrf.mxu0
        %v846 = vpop.f32.mrf.mxu0
        %847 = vdwg.mxu0
        %v848 = vsel %vm360, %v843, -inf
        %849 = vmax.xlane.f32.xlu0 %v848
        %v850 = vpop.xlane.xlu0 %849
        %v851 = vsub.f32 %v843, %v850
        %v852 = vmul.f32 %v851, 1.442695
        %v853 = vpow.pop %v852
        %v854 = vsel %vm360, %v853, 0.0
        %855 = vadd.xlane.f32.xlu0 %v854
        %v856 = vpop.xlane.xlu0 %855
        %v857 = vpack.c.bf16 %v853, %v853
        %858 = vrot.lane.b32.xlu0 %v797, 48
        %v859 = vpop.permute.xlu0 %858
        %v861 = vsel %vm360, %v857, 0
        %v864 = vsel %vm376, %v859, 0
        %866 = vmatprep.subr.bf16.mxu0 0
        %867 = vmatpush1.bf16.msra.mxu0 0
        %868 = vmatprep.subr.bf16.mxu0 0
        %869 = vmatpush1.bf16.msra.mxu0 0
        %870 = vmatprep.subr.bf16.mxu0 0
        %871 = vmatpush1.bf16.msra.mxu0 0
        %872 = vmatprep.subr.bf16.mxu0 0
        %873 = vmatpush1.bf16.msra.mxu0 0
        %874 = vmatprep.subr.bf16.mxu0 0
        %875 = vmatpush1.bf16.msra.mxu0 0
        %876 = vmatprep.subr.bf16.mxu0 0
        %877 = vmatpush1.bf16.msra.mxu0 0
        %878 = vmatprep.subr.bf16.mxu0 0
        %879 = vmatpush1.bf16.msra.mxu0 0
        %880 = vmatprep.subr.bf16.mxu0 0
        %881 = vmatpush1.bf16.msra.mxu0 %v864
        %882 = vmatprep.subr.bf16.mxu0 0
        %883 = vmatpush2.bf16.msra.mxu0 0
        %884 = vmatprep.subr.bf16.mxu0 0
        %885 = vmatpush2.bf16.msra.mxu0 0
        %886 = vmatprep.subr.bf16.mxu0 0
        %887 = vmatpush2.bf16.msra.mxu0 0
        %888 = vmatprep.subr.bf16.mxu0 0
        %889 = vmatpush2.bf16.msra.mxu0 0
        %890 = vmatprep.subr.bf16.mxu0 0
        %891 = vmatpush2.bf16.msra.mxu0 0
        %892 = vmatprep.subr.bf16.mxu0 0
        %893 = vmatpush2.bf16.msra.mxu0 0
        %894 = vmatprep.subr.bf16.mxu0 0
        %895 = vmatpush2.bf16.msra.mxu0 0
        %896 = vmatprep.subr.bf16.mxu0 0
        %897 = vmatpush2.bf16.msra.mxu0 0
        %898 = vmatprep.mubr.bf16.mxu0 0
        %899 = vmatmul.mubr.bf16.gmra.mxu0 %v861
        %v900 = vpop.f32.mrf.mxu0
        %v901 = vadd.f32 0.0, %v900
        %v902 = vpop.f32.mrf.mxu0
        %v903 = vpop.f32.mrf.mxu0
        %v904 = vpop.f32.mrf.mxu0
        %905 = vdwg.mxu0
        %v906 = vrcp.pop %v856
        %v907 = vmul.f32 %v901, %v906
        %v908 = vpack.c.bf16 %v907, %v907
        %v910 = vunpack.c.l.b16 %v908
        %v911 = vpack.c.b16 %v910, %v910
        %912 = vrot.lane.b32.xlu0 %v911, 16
        %v913 = vpop.permute.xlu0 %912
        %vm915 = vcmask 158848
        %916 = vst.msk [vmem:[#allocation3] sm:$0xf] %vm915, %v913
        %v917 = vld [vmem:[#allocation2] sm:$0xf]
        %v919 = vunpack.c.l.b16 %v917
        %v920 = vpack.c.b16 %v919, %v919
        %921 = vrot.lane.b32.xlu0 %v920, 108
        %v922 = vpop.permute.xlu0 %921
        %923 = vrot.lane.b32.xlu0 %v920, 76
        %v924 = vpop.permute.xlu0 %923
        %v926 = vsel %vm313, %v922, 0
        %v929 = vsel %vm313, %v924, 0
        %931 = vmatprep.subr.bf16.mxu0 0
        %932 = vmatpush1.bf16.xpose.msra.mxu0 0
        %933 = vmatprep.subr.bf16.mxu0 0
        %934 = vmatpush1.bf16.xpose.msra.mxu0 0
        %935 = vmatprep.subr.bf16.mxu0 0
        %936 = vmatpush1.bf16.xpose.msra.mxu0 0
        %937 = vmatprep.subr.bf16.mxu0 0
        %938 = vmatpush1.bf16.xpose.msra.mxu0 0
        %939 = vmatprep.subr.bf16.mxu0 0
        %940 = vmatpush1.bf16.xpose.msra.mxu0 0
        %941 = vmatprep.subr.bf16.mxu0 0
        %942 = vmatpush1.bf16.xpose.msra.mxu0 0
        %943 = vmatprep.subr.bf16.mxu0 0
        %944 = vmatpush1.bf16.xpose.msra.mxu0 0
        %945 = vmatprep.subr.bf16.mxu0 0
        %946 = vmatpush1.bf16.xpose.msra.mxu0 %v929
        %947 = vmatprep.subr.bf16.mxu0 0
        %948 = vmatpush2.bf16.xpose.msra.mxu0 0
        %949 = vmatprep.subr.bf16.mxu0 0
        %950 = vmatpush2.bf16.xpose.msra.mxu0 0
        %951 = vmatprep.subr.bf16.mxu0 0
        %952 = vmatpush2.bf16.xpose.msra.mxu0 0
        %953 = vmatprep.subr.bf16.mxu0 0
        %954 = vmatpush2.bf16.xpose.msra.mxu0 0
        %955 = vmatprep.subr.bf16.mxu0 0
        %956 = vmatpush2.bf16.xpose.msra.mxu0 0
        %957 = vmatprep.subr.bf16.mxu0 0
        %958 = vmatpush2.bf16.xpose.msra.mxu0 0
        %959 = vmatprep.subr.bf16.mxu0 0
        %960 = vmatpush2.bf16.xpose.msra.mxu0 0
        %961 = vmatprep.subr.bf16.mxu0 0
        %962 = vmatpush2.bf16.xpose.msra.mxu0 0
        %963 = vmatprep.mubr.bf16.mxu0 0
        %964 = vmatmul.mubr.bf16.gmra.mxu0 %v926
        %v965 = vpop.f32.mrf.mxu0
        %v966 = vadd.f32 0.0, %v965
        %v967 = vpop.f32.mrf.mxu0
        %v968 = vpop.f32.mrf.mxu0
        %v969 = vpop.f32.mrf.mxu0
        %970 = vdwg.mxu0
        %v971 = vsel %vm360, %v966, -inf
        %972 = vmax.xlane.f32.xlu0 %v971
        %v973 = vpop.xlane.xlu0 %972
        %v974 = vsub.f32 %v966, %v973
        %v975 = vmul.f32 %v974, 1.442695
        %v976 = vpow.pop %v975
        %v977 = vsel %vm360, %v976, 0.0
        %978 = vadd.xlane.f32.xlu0 %v977
        %v979 = vpop.xlane.xlu0 %978
        %v980 = vpack.c.bf16 %v976, %v976
        %981 = vrot.lane.b32.xlu0 %v920, 44
        %v982 = vpop.permute.xlu0 %981
        %v984 = vsel %vm360, %v980, 0
        %v987 = vsel %vm376, %v982, 0
        %989 = vmatprep.subr.bf16.mxu0 0
        %990 = vmatpush1.bf16.msra.mxu0 0
        %991 = vmatprep.subr.bf16.mxu0 0
        %992 = vmatpush1.bf16.msra.mxu0 0
        %993 = vmatprep.subr.bf16.mxu0 0
        %994 = vmatpush1.bf16.msra.mxu0 0
        %995 = vmatprep.subr.bf16.mxu0 0
        %996 = vmatpush1.bf16.msra.mxu0 0
        %997 = vmatprep.subr.bf16.mxu0 0
        %998 = vmatpush1.bf16.msra.mxu0 0
        %999 = vmatprep.subr.bf16.mxu0 0
        %1000 = vmatpush1.bf16.msra.mxu0 0
        %1001 = vmatprep.subr.bf16.mxu0 0
        %1002 = vmatpush1.bf16.msra.mxu0 0
        %1003 = vmatprep.subr.bf16.mxu0 0
        %1004 = vmatpush1.bf16.msra.mxu0 %v987
        %1005 = vmatprep.subr.bf16.mxu0 0
        %1006 = vmatpush2.bf16.msra.mxu0 0
        %1007 = vmatprep.subr.bf16.mxu0 0
        %1008 = vmatpush2.bf16.msra.mxu0 0
        %1009 = vmatprep.subr.bf16.mxu0 0
        %1010 = vmatpush2.bf16.msra.mxu0 0
        %1011 = vmatprep.subr.bf16.mxu0 0
        %1012 = vmatpush2.bf16.msra.mxu0 0
        %1013 = vmatprep.subr.bf16.mxu0 0
        %1014 = vmatpush2.bf16.msra.mxu0 0
        %1015 = vmatprep.subr.bf16.mxu0 0
        %1016 = vmatpush2.bf16.msra.mxu0 0
        %1017 = vmatprep.subr.bf16.mxu0 0
        %1018 = vmatpush2.bf16.msra.mxu0 0
        %1019 = vmatprep.subr.bf16.mxu0 0
        %1020 = vmatpush2.bf16.msra.mxu0 0
        %1021 = vmatprep.mubr.bf16.mxu0 0
        %1022 = vmatmul.mubr.bf16.gmra.mxu0 %v984
        %v1023 = vpop.f32.mrf.mxu0
        %v1024 = vadd.f32 0.0, %v1023
        %v1025 = vpop.f32.mrf.mxu0
        %v1026 = vpop.f32.mrf.mxu0
        %v1027 = vpop.f32.mrf.mxu0
        %1028 = vdwg.mxu0
        %v1029 = vrcp.pop %v979
        %v1030 = vmul.f32 %v1024, %v1029
        %v1031 = vpack.c.bf16 %v1030, %v1030
        %v1033 = vunpack.c.l.b16 %v1031
        %v1034 = vpack.c.b16 %v1033, %v1033
        %1035 = vrot.lane.b32.xlu0 %v1034, 20
        %v1036 = vpop.permute.xlu0 %1035
        %vm1038 = vcmask 191648
        %1039 = vst.msk [vmem:[#allocation3] sm:$0xf] %vm1038, %v1036
        %v1040 = vld [vmem:[#allocation2] sm:$0xf]
        %v1042 = vunpack.c.l.b16 %v1040
        %v1043 = vpack.c.b16 %v1042, %v1042
        %1044 = vrot.lane.b32.xlu0 %v1043, 104
        %v1045 = vpop.permute.xlu0 %1044
        %1046 = vrot.lane.b32.xlu0 %v1043, 72
        %v1047 = vpop.permute.xlu0 %1046
        %v1049 = vsel %vm313, %v1045, 0
        %v1052 = vsel %vm313, %v1047, 0
        %1054 = vmatprep.subr.bf16.mxu0 0
        %1055 = vmatpush1.bf16.xpose.msra.mxu0 0
        %1056 = vmatprep.subr.bf16.mxu0 0
        %1057 = vmatpush1.bf16.xpose.msra.mxu0 0
        %1058 = vmatprep.subr.bf16.mxu0 0
        %1059 = vmatpush1.bf16.xpose.msra.mxu0 0
        %1060 = vmatprep.subr.bf16.mxu0 0
        %1061 = vmatpush1.bf16.xpose.msra.mxu0 0
        %1062 = vmatprep.subr.bf16.mxu0 0
        %1063 = vmatpush1.bf16.xpose.msra.mxu0 0
        %1064 = vmatprep.subr.bf16.mxu0 0
        %1065 = vmatpush1.bf16.xpose.msra.mxu0 0
        %1066 = vmatprep.subr.bf16.mxu0 0
        %1067 = vmatpush1.bf16.xpose.msra.mxu0 0
        %1068 = vmatprep.subr.bf16.mxu0 0
        %1069 = vmatpush1.bf16.xpose.msra.mxu0 %v1052
        %1070 = vmatprep.subr.bf16.mxu0 0
        %1071 = vmatpush2.bf16.xpose.msra.mxu0 0
        %1072 = vmatprep.subr.bf16.mxu0 0
        %1073 = vmatpush2.bf16.xpose.msra.mxu0 0
        %1074 = vmatprep.subr.bf16.mxu0 0
        %1075 = vmatpush2.bf16.xpose.msra.mxu0 0
        %1076 = vmatprep.subr.bf16.mxu0 0
        %1077 = vmatpush2.bf16.xpose.msra.mxu0 0
        %1078 = vmatprep.subr.bf16.mxu0 0
        %1079 = vmatpush2.bf16.xpose.msra.mxu0 0
        %1080 = vmatprep.subr.bf16.mxu0 0
        %1081 = vmatpush2.bf16.xpose.msra.mxu0 0
        %1082 = vmatprep.subr.bf16.mxu0 0
        %1083 = vmatpush2.bf16.xpose.msra.mxu0 0
        %1084 = vmatprep.subr.bf16.mxu0 0
        %1085 = vmatpush2.bf16.xpose.msra.mxu0 0
        %1086 = vmatprep.mubr.bf16.mxu0 0
        %1087 = vmatmul.mubr.bf16.gmra.mxu0 %v1049
        %v1088 = vpop.f32.mrf.mxu0
        %v1089 = vadd.f32 0.0, %v1088
        %v1090 = vpop.f32.mrf.mxu0
        %v1091 = vpop.f32.mrf.mxu0
        %v1092 = vpop.f32.mrf.mxu0
        %1093 = vdwg.mxu0
        %v1094 = vsel %vm360, %v1089, -inf
        %1095 = vmax.xlane.f32.xlu0 %v1094
        %v1096 = vpop.xlane.xlu0 %1095
        %v1097 = vsub.f32 %v1089, %v1096
        %v1098 = vmul.f32 %v1097, 1.442695
        %v1099 = vpow.pop %v1098
        %v1100 = vsel %vm360, %v1099, 0.0
        %1101 = vadd.xlane.f32.xlu0 %v1100
        %v1102 = vpop.xlane.xlu0 %1101
        %v1103 = vpack.c.bf16 %v1099, %v1099
        %1104 = vrot.lane.b32.xlu0 %v1043, 40
        %v1105 = vpop.permute.xlu0 %1104
        %v1107 = vsel %vm360, %v1103, 0
        %v1110 = vsel %vm376, %v1105, 0
        %1112 = vmatprep.subr.bf16.mxu0 0
        %1113 = vmatpush1.bf16.msra.mxu0 0
        %1114 = vmatprep.subr.bf16.mxu0 0
        %1115 = vmatpush1.bf16.msra.mxu0 0
        %1116 = vmatprep.subr.bf16.mxu0 0
        %1117 = vmatpush1.bf16.msra.mxu0 0
        %1118 = vmatprep.subr.bf16.mxu0 0
        %1119 = vmatpush1.bf16.msra.mxu0 0
        %1120 = vmatprep.subr.bf16.mxu0 0
        %1121 = vmatpush1.bf16.msra.mxu0 0
        %1122 = vmatprep.subr.bf16.mxu0 0
        %1123 = vmatpush1.bf16.msra.mxu0 0
        %1124 = vmatprep.subr.bf16.mxu0 0
        %1125 = vmatpush1.bf16.msra.mxu0 0
        %1126 = vmatprep.subr.bf16.mxu0 0
        %1127 = vmatpush1.bf16.msra.mxu0 %v1110
        %1128 = vmatprep.subr.bf16.mxu0 0
        %1129 = vmatpush2.bf16.msra.mxu0 0
        %1130 = vmatprep.subr.bf16.mxu0 0
        %1131 = vmatpush2.bf16.msra.mxu0 0
        %1132 = vmatprep.subr.bf16.mxu0 0
        %1133 = vmatpush2.bf16.msra.mxu0 0
        %1134 = vmatprep.subr.bf16.mxu0 0
        %1135 = vmatpush2.bf16.msra.mxu0 0
        %1136 = vmatprep.subr.bf16.mxu0 0
        %1137 = vmatpush2.bf16.msra.mxu0 0
        %1138 = vmatprep.subr.bf16.mxu0 0
        %1139 = vmatpush2.bf16.msra.mxu0 0
        %1140 = vmatprep.subr.bf16.mxu0 0
        %1141 = vmatpush2.bf16.msra.mxu0 0
        %1142 = vmatprep.subr.bf16.mxu0 0
        %1143 = vmatpush2.bf16.msra.mxu0 0
        %1144 = vmatprep.mubr.bf16.mxu0 0
        %1145 = vmatmul.mubr.bf16.gmra.mxu0 %v1107
        %v1146 = vpop.f32.mrf.mxu0
        %v1147 = vadd.f32 0.0, %v1146
        %v1148 = vpop.f32.mrf.mxu0
        %v1149 = vpop.f32.mrf.mxu0
        %v1150 = vpop.f32.mrf.mxu0
        %1151 = vdwg.mxu0
        %v1152 = vrcp.pop %v1102
        %v1153 = vmul.f32 %v1147, %v1152
        %v1154 = vpack.c.bf16 %v1153, %v1153
        %v1156 = vunpack.c.l.b16 %v1154
        %v1157 = vpack.c.b16 %v1156, %v1156
        %1158 = vrot.lane.b32.xlu0 %v1157, 24
        %v1159 = vpop.permute.xlu0 %1158
        %vm1161 = vcmask 224448
        %1162 = vst.msk [vmem:[#allocation3] sm:$0xf] %vm1161, %v1159
        %v1163 = vld [vmem:[#allocation2] sm:$0xf]
        %v1165 = vunpack.c.l.b16 %v1163
        %v1166 = vpack.c.b16 %v1165, %v1165
        %1167 = vrot.lane.b32.xlu0 %v1166, 100
        %v1168 = vpop.permute.xlu0 %1167
        %1169 = vrot.lane.b32.xlu0 %v1166, 68
        %v1170 = vpop.permute.xlu0 %1169
        %v1172 = vsel %vm313, %v1168, 0
        %v1175 = vsel %vm313, %v1170, 0
        %1177 = vmatprep.subr.bf16.mxu0 0
        %1178 = vmatpush1.bf16.xpose.msra.mxu0 0
        %1179 = vmatprep.subr.bf16.mxu0 0
        %1180 = vmatpush1.bf16.xpose.msra.mxu0 0
        %1181 = vmatprep.subr.bf16.mxu0 0
        %1182 = vmatpush1.bf16.xpose.msra.mxu0 0
        %1183 = vmatprep.subr.bf16.mxu0 0
        %1184 = vmatpush1.bf16.xpose.msra.mxu0 0
        %1185 = vmatprep.subr.bf16.mxu0 0
        %1186 = vmatpush1.bf16.xpose.msra.mxu0 0
        %1187 = vmatprep.subr.bf16.mxu0 0
        %1188 = vmatpush1.bf16.xpose.msra.mxu0 0
        %1189 = vmatprep.subr.bf16.mxu0 0
        %1190 = vmatpush1.bf16.xpose.msra.mxu0 0
        %1191 = vmatprep.subr.bf16.mxu0 0
        %1192 = vmatpush1.bf16.xpose.msra.mxu0 %v1175
        %1193 = vmatprep.subr.bf16.mxu0 0
        %1194 = vmatpush2.bf16.xpose.msra.mxu0 0
        %1195 = vmatprep.subr.bf16.mxu0 0
        %1196 = vmatpush2.bf16.xpose.msra.mxu0 0
        %1197 = vmatprep.subr.bf16.mxu0 0
        %1198 = vmatpush2.bf16.xpose.msra.mxu0 0
        %1199 = vmatprep.subr.bf16.mxu0 0
        %1200 = vmatpush2.bf16.xpose.msra.mxu0 0
        %1201 = vmatprep.subr.bf16.mxu0 0
        %1202 = vmatpush2.bf16.xpose.msra.mxu0 0
        %1203 = vmatprep.subr.bf16.mxu0 0
        %1204 = vmatpush2.bf16.xpose.msra.mxu0 0
        %1205 = vmatprep.subr.bf16.mxu0 0
        %1206 = vmatpush2.bf16.xpose.msra.mxu0 0
        %1207 = vmatprep.subr.bf16.mxu0 0
        %1208 = vmatpush2.bf16.xpose.msra.mxu0 0
        %1209 = vmatprep.mubr.bf16.mxu0 0
        %1210 = vmatmul.mubr.bf16.gmra.mxu0 %v1172
        %v1211 = vpop.f32.mrf.mxu0
        %v1212 = vadd.f32 0.0, %v1211
        %v1213 = vpop.f32.mrf.mxu0
        %v1214 = vpop.f32.mrf.mxu0
        %v1215 = vpop.f32.mrf.mxu0
        %1216 = vdwg.mxu0
        %v1217 = vsel %vm360, %v1212, -inf
        %1218 = vmax.xlane.f32.xlu0 %v1217
        %v1219 = vpop.xlane.xlu0 %1218
        %v1220 = vsub.f32 %v1212, %v1219
        %v1221 = vmul.f32 %v1220, 1.442695
        %v1222 = vpow.pop %v1221
        %v1223 = vsel %vm360, %v1222, 0.0
        %1224 = vadd.xlane.f32.xlu0 %v1223
        %v1225 = vpop.xlane.xlu0 %1224
        %v1226 = vpack.c.bf16 %v1222, %v1222
        %1227 = vrot.lane.b32.xlu0 %v1166, 36
        %v1228 = vpop.permute.xlu0 %1227
        %v1230 = vsel %vm360, %v1226, 0
        %v1233 = vsel %vm376, %v1228, 0
        %1235 = vmatprep.subr.bf16.mxu0 0
        %1236 = vmatpush1.bf16.msra.mxu0 0
        %1237 = vmatprep.subr.bf16.mxu0 0
        %1238 = vmatpush1.bf16.msra.mxu0 0
        %1239 = vmatprep.subr.bf16.mxu0 0
        %1240 = vmatpush1.bf16.msra.mxu0 0
        %1241 = vmatprep.subr.bf16.mxu0 0
        %1242 = vmatpush1.bf16.msra.mxu0 0
        %1243 = vmatprep.subr.bf16.mxu0 0
        %1244 = vmatpush1.bf16.msra.mxu0 0
        %1245 = vmatprep.subr.bf16.mxu0 0
        %1246 = vmatpush1.bf16.msra.mxu0 0
        %1247 = vmatprep.subr.bf16.mxu0 0
        %1248 = vmatpush1.bf16.msra.mxu0 0
        %1249 = vmatprep.subr.bf16.mxu0 0
        %1250 = vmatpush1.bf16.msra.mxu0 %v1233
        %1251 = vmatprep.subr.bf16.mxu0 0
        %1252 = vmatpush2.bf16.msra.mxu0 0
        %1253 = vmatprep.subr.bf16.mxu0 0
        %1254 = vmatpush2.bf16.msra.mxu0 0
        %1255 = vmatprep.subr.bf16.mxu0 0
        %1256 = vmatpush2.bf16.msra.mxu0 0
        %1257 = vmatprep.subr.bf16.mxu0 0
        %1258 = vmatpush2.bf16.msra.mxu0 0
        %1259 = vmatprep.subr.bf16.mxu0 0
        %1260 = vmatpush2.bf16.msra.mxu0 0
        %1261 = vmatprep.subr.bf16.mxu0 0
        %1262 = vmatpush2.bf16.msra.mxu0 0
        %1263 = vmatprep.subr.bf16.mxu0 0
        %1264 = vmatpush2.bf16.msra.mxu0 0
        %1265 = vmatprep.subr.bf16.mxu0 0
        %1266 = vmatpush2.bf16.msra.mxu0 0
        %1267 = vmatprep.mubr.bf16.mxu0 0
        %1268 = vmatmul.mubr.bf16.gmra.mxu0 %v1230
        %v1269 = vpop.f32.mrf.mxu0
        %v1270 = vadd.f32 0.0, %v1269
        %v1271 = vpop.f32.mrf.mxu0
        %v1272 = vpop.f32.mrf.mxu0
        %v1273 = vpop.f32.mrf.mxu0
        %1274 = vdwg.mxu0
        %v1275 = vrcp.pop %v1225
        %v1276 = vmul.f32 %v1270, %v1275
        %v1277 = vpack.c.bf16 %v1276, %v1276
        %v1279 = vunpack.c.l.b16 %v1277
        %v1280 = vpack.c.b16 %v1279, %v1279
        %1281 = vrot.lane.b32.xlu0 %v1280, 28
        %v1282 = vpop.permute.xlu0 %1281
        %vm1284 = vcmask 257248
        %1285 = vst.msk [vmem:[#allocation3] sm:$0xf] %vm1284, %v1282
        %v1286 = vld [vmem:[#allocation3] sm:$0xf]
        %v1287 = vld [vmem:[#allocation9] sm:$0xf]
        %v1288 = vld [vmem:[#allocation9 + $0x4] sm:$0xf]
        %v1289 = vld [vmem:[#allocation9 + $0x8] sm:$0xf]
        %v1290 = vld [vmem:[#allocation9 + $0xc] sm:$0xf]
        %v1291 = vld [vmem:[%s3] sm:$0x1]
        %v1293 = vlaneseq
        %v1294 = vshrl.u32 %v1293, 7
        %v1295 = vsub.s32 0, %v1294
        %v1296 = vrot.slane %v1291, %v1295
        %v1302 = vunpack.c.l.b16 %v1287
        %v1303 = vunpack.c.l.b16 %v1288
        %v1304 = vunpack.c.l.b16 %v1289
        %v1305 = vunpack.c.l.b16 %v1290
        %v1306 = vpack.c.b16 %v1303, %v1302
        %v1307 = vpack.c.b16 %v1305, %v1304
        %v1311 = vsel %vm260, %v1286, 0
        %1313 = vmatprep.subr.bf16.mxu0 0
        %1314 = vmatpush1.bf16.msra.mxu0 0
        %1315 = vmatprep.subr.bf16.mxu0 0
        %1316 = vmatpush1.bf16.msra.mxu0 0
        %1317 = vmatprep.subr.bf16.mxu0 0
        %1318 = vmatpush1.bf16.msra.mxu0 0
        %1319 = vmatprep.subr.bf16.mxu0 0
        %1320 = vmatpush1.bf16.msra.mxu0 0
        %1321 = vmatprep.subr.bf16.mxu0 0
        %1322 = vmatpush1.bf16.msra.mxu0 0
        %1323 = vmatprep.subr.bf16.mxu0 0
        %1324 = vmatpush1.bf16.msra.mxu0 0
        %1325 = vmatprep.subr.bf16.mxu0 0
        %1326 = vmatpush1.bf16.msra.mxu0 %v1307
        %1327 = vmatprep.subr.bf16.mxu0 0
        %1328 = vmatpush1.bf16.msra.mxu0 %v1306
        %1329 = vmatprep.subr.bf16.mxu0 0
        %1330 = vmatpush2.bf16.msra.mxu0 0
        %1331 = vmatprep.subr.bf16.mxu0 0
        %1332 = vmatpush2.bf16.msra.mxu0 0
        %1333 = vmatprep.subr.bf16.mxu0 0
        %1334 = vmatpush2.bf16.msra.mxu0 0
        %1335 = vmatprep.subr.bf16.mxu0 0
        %1336 = vmatpush2.bf16.msra.mxu0 0
        %1337 = vmatprep.subr.bf16.mxu0 0
        %1338 = vmatpush2.bf16.msra.mxu0 0
        %1339 = vmatprep.subr.bf16.mxu0 0
        %1340 = vmatpush2.bf16.msra.mxu0 0
        %1341 = vmatprep.subr.bf16.mxu0 0
        %1342 = vmatpush2.bf16.msra.mxu0 0
        %1343 = vmatprep.subr.bf16.mxu0 0
        %1344 = vmatpush2.bf16.msra.mxu0 0
        %1345 = vmatprep.mubr.bf16.mxu0 0
        %1346 = vmatmul.mubr.bf16.gmra.mxu0 %v1311
        %v1347 = vpop.f32.mrf.mxu0
        %v1348 = vadd.f32 %v1296, %v1347
        %v1349 = vpop.f32.mrf.mxu0
        %v1350 = vpop.f32.mrf.mxu0
        %v1351 = vpop.f32.mrf.mxu0
        %1352 = vdwg.mxu0
        %1353 = vst.msk [vmem:[%s241] sm:$0xff] %vm260, %v1348
        %s1354 = sand.u32 %s119, 1
        %s1355 = scalar_lea.sflag [#allocation6], %s1354
        %s1356 = sand.u32 %s119, 1
        %s1357 = smul.addr %s1356, 8
        %s1358 = scalar_lea.vmem [#allocation10], %s1357
        // Predicated region
        $region49: #{tpu_custom_call.1} parent=35 // pred_check
          %p1359 = pneg %p129
        $region50: #{tpu_custom_call.1} parent=35 // pred_check_branch
          %1361 = sbr.rel (%p1359) target = $region52
        $region51: #{tpu_custom_call.1} parent=35 // pred_region
          %s1363 = ssub.s32 128, 128
          %1364 = vsyncadd %s1355, %s1363
          %s1365 = smul.addr %s22, 128
          %s1366 = scalar_lea.hbm %s4, %s1365
          %s1368 = sshll.u32 %s1358, 4
          %s1369 = int_to_ptr.vmem [resolvable:$true] %s1368
          %1371 = dma.vmem_to_hbm [thread:$0]  %s1369, 128, %s1366, %s1355
        $region52: #{tpu_custom_call.1} parent=35 // pred_fallthru
          _
      $region36: #{tpu_custom_call.1} parent=5 // pred_fallthru
        _
      %p1372 = scmp.le.s32.totalorder 2, %s17
      // Predicated region
      $region53: #{tpu_custom_call.1} parent=5 // pred_check
        %p1373 = pneg %p1372
      $region54: #{tpu_custom_call.1} parent=5 // pred_check_branch
        %1375 = sbr.rel (%p1373) target = $region56
      $region55: #{tpu_custom_call.1} parent=5 // pred_region
        %s1376 = ssub.s32 %s17, 2
        // Predicated region
        $region57: #{tpu_custom_call.1} parent=55 // pred_check
          %p1377 = pneg %p135
        $region58: #{tpu_custom_call.1} parent=55 // pred_check_branch
          %1379 = sbr.rel (%p1377) target = $region60
        $region59: #{tpu_custom_call.1} parent=55 // pred_region
          %s1380 = sand.u32 %s120, 1
          %s1381 = scalar_lea.sflag [#allocation6], %s1380
          %s1382 = sand.u32 %s120, 1
          %s1383 = smul.addr %s1382, 8
          %s1384 = scalar_lea.vmem [#allocation10], %s1383
          %1385 = dma.done %s1381, 128
        $region60: #{tpu_custom_call.1} parent=55 // pred_fallthru
          _
      $region56: #{tpu_custom_call.1} parent=5 // pred_fallthru
        _
    $region6: #{tpu_custom_call.1} parent=1 // loop_footer
      %s21 = sadd.s32 1, %s17
    $region7: #{tpu_custom_call.1} parent=1 // loop_footer_branch
      %16 = sbr.rel target = $region3
    $region8: #{tpu_custom_call.1} parent=1 // loop_exit
      _
    %1386 = vsyncpa [#allocation5], 1
    %s1387 = scalar_lea.sflag [#allocation5], 1
    %1388 = vsyncpa %s1387, 1
    %1389 = vsyncpa [#allocation8], 1
    %1390 = vsyncpa [#allocation6], 1
    %s1391 = scalar_lea.sflag [#allocation6], 1
    %1392 = vsyncpa %s1391, 1

</llo_original>
